<compile_context>
chip_gen: v5e
topology: v5e:2x2
jax: 0.10.0
libtpu: 0.0.40
codegen_flags: <defaults>
</compile_context>

<pallas_src>
import math
import functools

import jax
import jax.numpy as jnp
from jax.experimental import pallas as pl
from jax.experimental.pallas import tpu as pltpu


# Scoped-VMEM cap: comfortably inside v7x's 64 MiB physical VMEM and far above the
# few-MiB working sets of the tiles below.
VMEM_LIMIT_BYTES = 48 * 1024 * 1024


def _pick_tile(dim, target, align):
    """Largest tile <= target that divides `dim` and is a multiple of `align`.

    Falls back to the full dimension (always a legal block size for the last two
    block dims).
    """
    if dim <= target:
        return dim
    t = (target // align) * align
    while t >= align:
        if dim % t == 0:
            return t
        t -= align
    return dim


# ----------------------------------------------------------------------------
# Fused QKV projection: q/k/v = x @ W_{q,k,v} + b_{q,k,v}
# Full-K, full-N tiles; weights VMEM-resident (constant block index); x streamed
# once; no accumulator scratch needed.
# ----------------------------------------------------------------------------
def _qkv_proj_kernel(x_ref, wq_ref, wk_ref, wv_ref, bq_ref, bk_ref, bv_ref,
                     q_ref, k_ref, v_ref):
    x = x_ref[...]
    q_ref[...] = (jnp.dot(x, wq_ref[...], preferred_element_type=jnp.float32)
                  + bq_ref[...]).astype(q_ref.dtype)
    k_ref[...] = (jnp.dot(x, wk_ref[...], preferred_element_type=jnp.float32)
                  + bk_ref[...]).astype(k_ref.dtype)
    v_ref[...] = (jnp.dot(x, wv_ref[...], preferred_element_type=jnp.float32)
                  + bv_ref[...]).astype(v_ref.dtype)


def pallas_qkv_projection(x2d, w_q, w_k, w_v, b_q, b_k, b_v, *,
                          tm_target=512, out_dtype=None):
    M, K = x2d.shape
    C = w_q.shape[1]
    out_dtype = out_dtype or x2d.dtype

    tm = _pick_tile(M, tm_target, 16)    # 16-aligned sublane tile for bf16
    grid = (M // tm,)

    x_spec = pl.BlockSpec((tm, K), lambda i: (i, 0))
    w_spec = pl.BlockSpec((K, C), lambda i: (0, 0))   # resident weight
    b_spec = pl.BlockSpec((1, C), lambda i: (0, 0))
    o_spec = pl.BlockSpec((tm, C), lambda i: (i, 0))
    out = jax.ShapeDtypeStruct((M, C), out_dtype)

    return pl.pallas_call(
        _qkv_proj_kernel,
        out_shape=(out, out, out),
        grid_spec=pltpu.PrefetchScalarGridSpec(
            num_scalar_prefetch=0,
            grid=grid,
            in_specs=[x_spec, w_spec, w_spec, w_spec, b_spec, b_spec, b_spec],
            out_specs=(o_spec, o_spec, o_spec),
        ),
        compiler_params=pltpu.CompilerParams(
            dimension_semantics=("parallel",),
            vmem_limit_bytes=VMEM_LIMIT_BYTES,
        ),
    )(x2d, w_q, w_k, w_v,
      b_q.reshape(1, C).astype(jnp.float32),
      b_k.reshape(1, C).astype(jnp.float32),
      b_v.reshape(1, C).astype(jnp.float32))


# ----------------------------------------------------------------------------
# Output projection: y = x @ W + b (full-K, full-N, resident weight)
# ----------------------------------------------------------------------------
def _linear_kernel(x_ref, w_ref, b_ref, o_ref):
    o_ref[...] = (jnp.dot(x_ref[...], w_ref[...],
                          preferred_element_type=jnp.float32)
                  + b_ref[...]).astype(o_ref.dtype)


def pallas_linear(x2d, w, b, *, tm_target=512, out_dtype=None):
    M, K = x2d.shape
    K2, N = w.shape
    assert K == K2, (K, K2)
    out_dtype = out_dtype or x2d.dtype

    tm = _pick_tile(M, tm_target, 16)
    grid = (M // tm,)

    return pl.pallas_call(
        _linear_kernel,
        out_shape=jax.ShapeDtypeStruct((M, N), out_dtype),
        grid_spec=pltpu.PrefetchScalarGridSpec(
            num_scalar_prefetch=0,
            grid=grid,
            in_specs=[
                pl.BlockSpec((tm, K), lambda i: (i, 0)),
                pl.BlockSpec((K, N), lambda i: (0, 0)),   # resident weight
                pl.BlockSpec((1, N), lambda i: (0, 0)),
            ],
            out_specs=pl.BlockSpec((tm, N), lambda i: (i, 0)),
        ),
        compiler_params=pltpu.CompilerParams(
            dimension_semantics=("parallel",),
            vmem_limit_bytes=VMEM_LIMIT_BYTES,
        ),
    )(x2d, w, b.reshape(1, N).astype(jnp.float32))


# ----------------------------------------------------------------------------
# Flash-style causal attention on (blk, C) slabs.
# Grid = (B, n_pairs) over a lower-triangular (qi, ki) enumeration provided via
# scalar prefetch; online-softmax state persists in VMEM scratch across the
# "arbitrary" pair axis; head split/merge done in-kernel with static lane slices.
# ----------------------------------------------------------------------------
def _flash_attn_kernel(qi_tab_ref, ki_tab_ref, q_ref, k_ref, v_ref, o_ref,
                       q_sc, m_sc, l_sc, acc_sc, *, n_head, head_dim, sm_scale):
    p_idx = pl.program_id(1)
    qi = qi_tab_ref[p_idx]
    ki = ki_tab_ref[p_idx]

    @pl.when(ki == 0)
    def _init():
        # Hoisted q scaling: once per q row, not once per kv step.
        q_sc[...] = q_ref[...] * sm_scale
        m_sc[...] = jnp.full(m_sc.shape, -jnp.inf, m_sc.dtype)
        l_sc[...] = jnp.zeros(l_sc.shape, l_sc.dtype)
        acc_sc[...] = jnp.zeros(acc_sc.shape, acc_sc.dtype)

    def _update(masked):
        k_slab = k_ref[...]                       # (blk, C) bf16
        v_slab = v_ref[...]                       # (blk, C) bf16
        for h in range(n_head):
            sl = slice(h * head_dim, (h + 1) * head_dim)
            q_h = q_sc[:, sl]                     # (blk, Dh) bf16 (pre-scaled)
            # QK^T via dot_general (contracting last dims) -- no explicit k.T.
            s = jnp.einsum("qd,kd->qk", q_h, k_slab[:, sl],
                           preferred_element_type=jnp.float32)   # (blk, blk) f32
            if masked:
                # Diagonal tile only (qi == ki): local row/col comparison.
                rows = jax.lax.broadcasted_iota(jnp.int32, s.shape, 0)
                cols = jax.lax.broadcasted_iota(jnp.int32, s.shape, 1)
                s = jnp.where(cols <= rows, s, -jnp.inf)

            m_prev = m_sc[h]                                      # (blk, 1)
            m_new = jnp.maximum(m_prev, s.max(axis=-1, keepdims=True))
            alpha = jnp.exp(m_prev - m_new)
            p = jnp.exp(s - m_new)                                # (blk, blk)
            l_sc[h] = alpha * l_sc[h] + p.sum(axis=-1, keepdims=True)
            acc_sc[h] = alpha * acc_sc[h] + jnp.einsum(
                "qk,kd->qd", p.astype(v_slab.dtype), v_slab[:, sl],
                preferred_element_type=jnp.float32)               # (blk, Dh)
            m_sc[h] = m_new

    @pl.when(ki < qi)
    def _off_diag():
        _update(masked=False)

    @pl.when(ki == qi)
    def _diag_and_finalize():
        _update(masked=True)
        # ki == qi is the last kv step of this q row (triangular enumeration):
        # normalize and write the full lane-dense (blk, C) output slab.
        for h in range(n_head):
            sl = slice(h * head_dim, (h + 1) * head_dim)
            inv_l = pl.reciprocal(l_sc[h], approx=True)           # EUP, ~free
            o_ref[:, sl] = (acc_sc[h] * inv_l).astype(o_ref.dtype)


def pallas_flash_attention(q2d, k2d, v2d, *, n_head, seq_len, sm_scale,
                           t_target=256):
    """q2d/k2d/v2d: (B*T, C) -> (B*T, C); causal flash attention, heads in lanes."""
    M, C = q2d.shape
    assert M % seq_len == 0
    B = M // seq_len
    head_dim = C // n_head

    blk = _pick_tile(seq_len, t_target, 16)
    nq = seq_len // blk

    # Lower-triangular (qi, ki) enumeration -- no dead grid steps.
    qi_list, ki_list = [], []
    for qi in range(nq):
        for ki in range(qi + 1):
            qi_list.append(qi)
            ki_list.append(ki)
    qi_tab = jnp.asarray(qi_list, dtype=jnp.int32)
    ki_tab = jnp.asarray(ki_list, dtype=jnp.int32)
    n_pairs = len(qi_list)

    kern = functools.partial(_flash_attn_kernel, n_head=n_head,
                             head_dim=head_dim, sm_scale=sm_scale)

    def q_index(b, p, qi_ref, ki_ref):
        return (b * nq + qi_ref[p], 0)

    def kv_index(b, p, qi_ref, ki_ref):
        return (b * nq + ki_ref[p], 0)

    slab = pl.BlockSpec((blk, C), q_index)
    kv_slab = pl.BlockSpec((blk, C), kv_index)

    # TODO(synk): on v7x (2 TCs) a small B leaves the parallel axis short; if B is
    #             1-2, consider splitting rows across cores via core_map instead.
    return pl.pallas_call(
        kern,
        out_shape=jax.ShapeDtypeStruct((M, C), q2d.dtype),
        grid_spec=pltpu.PrefetchScalarGridSpec(
            num_scalar_prefetch=2,
            grid=(B, n_pairs),
            in_specs=[slab, kv_slab, kv_slab],
            out_specs=pl.BlockSpec((blk, C), q_index),
            scratch_shapes=[
                pltpu.VMEM((blk, C), q2d.dtype),              # scaled q (per row)
                pltpu.VMEM((n_head, blk, 1), jnp.float32),    # running max m
                pltpu.VMEM((n_head, blk, 1), jnp.float32),    # running denom l
                pltpu.VMEM((n_head, blk, head_dim), jnp.float32),  # output acc
            ],
        ),
        compiler_params=pltpu.CompilerParams(
            dimension_semantics=("parallel", "arbitrary"),
            vmem_limit_bytes=VMEM_LIMIT_BYTES,
        ),
    )(qi_tab, ki_tab, q2d, k2d, v2d)


# ----------------------------------------------------------------------------
# Forward pass
# ----------------------------------------------------------------------------
def gpt2_attention_forward(x, params, n_head):
    """x: (B, T, C) bfloat16. Returns (B, T, C) bfloat16."""
    B, T, C = x.shape
    head_dim = C // n_head
    x2d = x.reshape(B * T, C)

    w_attn, b_attn = params["w_attn"], params["b_attn"]
    w_q, w_k, w_v = w_attn[:, :C], w_attn[:, C:2 * C], w_attn[:, 2 * C:]
    b_q, b_k, b_v = b_attn[:C], b_attn[C:2 * C], b_attn[2 * C:]

    # Fused c_attn: x streamed once, three resident weights, three (B*T, C) outputs.
    q2d, k2d, v2d = pallas_qkv_projection(x2d, w_q, w_k, w_v, b_q, b_k, b_v)

    # Causal flash attention on lane-dense (blk, C) slabs (head split in-kernel).
    attn2d = pallas_flash_attention(
        q2d, k2d, v2d, n_head=n_head, seq_len=T,
        sm_scale=1.0 / math.sqrt(head_dim))

    # c_proj (dropouts are identity in eval mode; see TODO at top of file).
    out = pallas_linear(attn2d, params["w_proj"], params["b_proj"])
    return out.reshape(B, T, C)


# ----------------------------------------------------------------------------
# Pure-JAX reference (mirrors the bf16-operand / f32-accumulation dtype flow)
# ----------------------------------------------------------------------------
def reference_forward(x, params, n_head):
    B, T, C = x.shape
    head_dim = C // n_head

    qkv = (jnp.dot(x.reshape(B * T, C), params["w_attn"],
                   preferred_element_type=jnp.float32)
           + params["b_attn"]).astype(jnp.bfloat16).reshape(B, T, 3 * C)
    q, k, v = jnp.split(qkv, 3, axis=-1)

    def sh(t_):
        return t_.reshape(B, T, n_head, head_dim).transpose(0, 2, 1, 3)

    q, k, v = sh(q), sh(k), sh(v)
    s = jnp.einsum("bhqd,bhkd->bhqk", q, k,
                   preferred_element_type=jnp.float32) / math.sqrt(head_dim)
    mask = jnp.tril(jnp.ones((T, T), dtype=bool))
    s = jnp.where(mask[None, None], s, -jnp.inf)
    p = jax.nn.softmax(s, axis=-1)
    o = jnp.einsum("bhqk,bhkd->bhqd", p, v.astype(jnp.float32))
    o = o.astype(jnp.bfloat16).transpose(0, 2, 1, 3).reshape(B * T, C)
    out = (jnp.dot(o, params["w_proj"], preferred_element_type=jnp.float32)
           + params["b_proj"]).astype(jnp.bfloat16)
    return out.reshape(B, T, C)


# ----------------------------------------------------------------------------
# Main
# ----------------------------------------------------------------------------
if __name__ == "__main__":
    B, T, n_embd, n_head = 2, 8, 32, 4

    key = jax.random.PRNGKey(0)
    k_x, k_wa, k_ba, k_wp, k_bp = jax.random.split(key, 5)

    x = jax.random.normal(k_x, (B, T, n_embd), dtype=jnp.float32)

    # GPT-2 style init; weights stored in bf16 (MXU-native), biases in f32.
    params = {
        "w_attn": (jax.random.normal(k_wa, (n_embd, 3 * n_embd), jnp.float32)
                   * 0.02).astype(jnp.bfloat16),
        "b_attn": jax.random.normal(k_ba, (3 * n_embd,), jnp.float32) * 0.01,
        "w_proj": (jax.random.normal(k_wp, (n_embd, n_embd), jnp.float32)
                   * 0.02).astype(jnp.bfloat16),
        "b_proj": jax.random.normal(k_bp, (n_embd,), jnp.float32) * 0.01,
    }

    x_bf16 = x.astype(jnp.bfloat16)

    fwd = jax.jit(functools.partial(gpt2_attention_forward, n_head=n_head))
    out = jax.block_until_ready(fwd(x_bf16, params))

    ref = reference_forward(x_bf16, params, n_head)

    assert out.shape == (B, T, n_embd)
    assert jnp.allclose(out.astype(jnp.float32), ref.astype(jnp.float32),
                        atol=2e-2, rtol=2e-2), "mismatch vs reference"

    print("KERNEL_OK")
</pallas_src>

<mosaic_0001>
module attributes {stable_mosaic.version = 11 : i64} {
  func.func @_qkv_proj_kernel(%arg0: i32, %arg1: memref<16x32xbf16, #tpu.memory_space<vmem>>, %arg2: memref<32x32xbf16, #tpu.memory_space<vmem>>, %arg3: memref<32x32xbf16, #tpu.memory_space<vmem>>, %arg4: memref<32x32xbf16, #tpu.memory_space<vmem>>, %arg5: memref<1x32xf32, #tpu.memory_space<vmem>>, %arg6: memref<1x32xf32, #tpu.memory_space<vmem>>, %arg7: memref<1x32xf32, #tpu.memory_space<vmem>>, %arg8: memref<16x32xbf16, #tpu.memory_space<vmem>>, %arg9: memref<16x32xbf16, #tpu.memory_space<vmem>>, %arg10: memref<16x32xbf16, #tpu.memory_space<vmem>>) attributes {dimension_semantics = [#tpu.dimension_semantics<parallel>], iteration_bounds = array<i64: 1>, scalar_prefetch = 0 : i64, scratch_operands = 0 : i64, tpu.core_type = #tpu.core_type<tc>, window_params = [{transform_indices = @transform_0, window_bounds = array<i64: 16, 32>}, {pipeline_mode = #tpu.pipeline_mode<synchronous>, transform_indices = @transform_1, window_bounds = array<i64: 32, 32>}, {pipeline_mode = #tpu.pipeline_mode<synchronous>, transform_indices = @transform_2, window_bounds = array<i64: 32, 32>}, {pipeline_mode = #tpu.pipeline_mode<synchronous>, transform_indices = @transform_3, window_bounds = array<i64: 32, 32>}, {pipeline_mode = #tpu.pipeline_mode<synchronous>, transform_indices = @transform_4, window_bounds = array<i64: 1, 32>}, {pipeline_mode = #tpu.pipeline_mode<synchronous>, transform_indices = @transform_5, window_bounds = array<i64: 1, 32>}, {pipeline_mode = #tpu.pipeline_mode<synchronous>, transform_indices = @transform_6, window_bounds = array<i64: 1, 32>}, {transform_indices = @transform_7, window_bounds = array<i64: 16, 32>}, {transform_indices = @transform_8, window_bounds = array<i64: 16, 32>}, {transform_indices = @transform_9, window_bounds = array<i64: 16, 32>}]} {
    %c0 = arith.constant 0 : index
    %c0_0 = arith.constant 0 : index
    %0 = vector.load %arg1[%c0, %c0_0] : memref<16x32xbf16, #tpu.memory_space<vmem>>, vector<16x32xbf16>
    %c0_1 = arith.constant 0 : index
    %c0_2 = arith.constant 0 : index
    %1 = vector.load %arg2[%c0_1, %c0_2] : memref<32x32xbf16, #tpu.memory_space<vmem>>, vector<32x32xbf16>
    %cst = arith.constant dense<0.000000e+00> : vector<16x32xf32>
    %2 = tpu.matmul %0, %1, %cst {dimension_numbers = #tpu.dot_dimension_numbers<[1], [0], [0], [1], [0, 0, 1, 1], [], []>} : vector<16x32xbf16>, vector<32x32xbf16>, vector<16x32xf32> -> vector<16x32xf32>
    %c0_3 = arith.constant 0 : index
    %c0_4 = arith.constant 0 : index
    %3 = vector.load %arg5[%c0_3, %c0_4] : memref<1x32xf32, #tpu.memory_space<vmem>>, vector<1x32xf32>
    %4 = vector.broadcast %3 : vector<1x32xf32> to vector<16x32xf32>
    %5 = arith.addf %2, %4 : vector<16x32xf32>
    %6 = arith.truncf %5 : vector<16x32xf32> to vector<16x32xbf16>
    %c0_5 = arith.constant 0 : index
    %c0_6 = arith.constant 0 : index
    %7 = vector.load %arg8[%c0_5, %c0_6] : memref<16x32xbf16, #tpu.memory_space<vmem>>, vector<16x32xbf16>
    tpu.vector_store %arg8[%c0_5, %c0_6], %6 {strides = array<i32>} : memref<16x32xbf16, #tpu.memory_space<vmem>>, vector<16x32xbf16>,
    %c0_7 = arith.constant 0 : index
    %c0_8 = arith.constant 0 : index
    %8 = vector.load %arg3[%c0_7, %c0_8] : memref<32x32xbf16, #tpu.memory_space<vmem>>, vector<32x32xbf16>
    %cst_9 = arith.constant dense<0.000000e+00> : vector<16x32xf32>
    %9 = tpu.matmul %0, %8, %cst_9 {dimension_numbers = #tpu.dot_dimension_numbers<[1], [0], [0], [1], [0, 0, 1, 1], [], []>} : vector<16x32xbf16>, vector<32x32xbf16>, vector<16x32xf32> -> vector<16x32xf32>
    %c0_10 = arith.constant 0 : index
    %c0_11 = arith.constant 0 : index
    %10 = vector.load %arg6[%c0_10, %c0_11] : memref<1x32xf32, #tpu.memory_space<vmem>>, vector<1x32xf32>
    %11 = vector.broadcast %10 : vector<1x32xf32> to vector<16x32xf32>
    %12 = arith.addf %9, %11 : vector<16x32xf32>
    %13 = arith.truncf %12 : vector<16x32xf32> to vector<16x32xbf16>
    %c0_12 = arith.constant 0 : index
    %c0_13 = arith.constant 0 : index
    %14 = vector.load %arg9[%c0_12, %c0_13] : memref<16x32xbf16, #tpu.memory_space<vmem>>, vector<16x32xbf16>
    tpu.vector_store %arg9[%c0_12, %c0_13], %13 {strides = array<i32>} : memref<16x32xbf16, #tpu.memory_space<vmem>>, vector<16x32xbf16>,
    %c0_14 = arith.constant 0 : index
    %c0_15 = arith.constant 0 : index
    %15 = vector.load %arg4[%c0_14, %c0_15] : memref<32x32xbf16, #tpu.memory_space<vmem>>, vector<32x32xbf16>
    %cst_16 = arith.constant dense<0.000000e+00> : vector<16x32xf32>
    %16 = tpu.matmul %0, %15, %cst_16 {dimension_numbers = #tpu.dot_dimension_numbers<[1], [0], [0], [1], [0, 0, 1, 1], [], []>} : vector<16x32xbf16>, vector<32x32xbf16>, vector<16x32xf32> -> vector<16x32xf32>
    %c0_17 = arith.constant 0 : index
    %c0_18 = arith.constant 0 : index
    %17 = vector.load %arg7[%c0_17, %c0_18] : memref<1x32xf32, #tpu.memory_space<vmem>>, vector<1x32xf32>
    %18 = vector.broadcast %17 : vector<1x32xf32> to vector<16x32xf32>
    %19 = arith.addf %16, %18 : vector<16x32xf32>
    %20 = arith.truncf %19 : vector<16x32xf32> to vector<16x32xbf16>
    %c0_19 = arith.constant 0 : index
    %c0_20 = arith.constant 0 : index
    %21 = vector.load %arg10[%c0_19, %c0_20] : memref<16x32xbf16, #tpu.memory_space<vmem>>, vector<16x32xbf16>
    tpu.vector_store %arg10[%c0_19, %c0_20], %20 {strides = array<i32>} : memref<16x32xbf16, #tpu.memory_space<vmem>>, vector<16x32xbf16>,
    return
  }
  func.func @transform_0(%arg0: i32) -> (i32, i32) {
    %c0_i32 = arith.constant 0 : i32
    %c0_i32_0 = arith.constant 0 : i32
    return %arg0, %c0_i32 : i32, i32
  }
  func.func @transform_1(%arg0: i32) -> (i32, i32) {
    %c0_i32 = arith.constant 0 : i32
    %c0_i32_0 = arith.constant 0 : i32
    %c0_i32_1 = arith.constant 0 : i32
    return %c0_i32, %c0_i32_0 : i32, i32
  }
  func.func @transform_2(%arg0: i32) -> (i32, i32) {
    %c0_i32 = arith.constant 0 : i32
    %c0_i32_0 = arith.constant 0 : i32
    %c0_i32_1 = arith.constant 0 : i32
    return %c0_i32, %c0_i32_0 : i32, i32
  }
  func.func @transform_3(%arg0: i32) -> (i32, i32) {
    %c0_i32 = arith.constant 0 : i32
    %c0_i32_0 = arith.constant 0 : i32
    %c0_i32_1 = arith.constant 0 : i32
    return %c0_i32, %c0_i32_0 : i32, i32
  }
  func.func @transform_4(%arg0: i32) -> (i32, i32) {
    %c0_i32 = arith.constant 0 : i32
    %c0_i32_0 = arith.constant 0 : i32
    %c0_i32_1 = arith.constant 0 : i32
    return %c0_i32, %c0_i32_0 : i32, i32
  }
  func.func @transform_5(%arg0: i32) -> (i32, i32) {
    %c0_i32 = arith.constant 0 : i32
    %c0_i32_0 = arith.constant 0 : i32
    %c0_i32_1 = arith.constant 0 : i32
    return %c0_i32, %c0_i32_0 : i32, i32
  }
  func.func @transform_6(%arg0: i32) -> (i32, i32) {
    %c0_i32 = arith.constant 0 : i32
    %c0_i32_0 = arith.constant 0 : i32
    %c0_i32_1 = arith.constant 0 : i32
    return %c0_i32, %c0_i32_0 : i32, i32
  }
  func.func @transform_7(%arg0: i32) -> (i32, i32) {
    %c0_i32 = arith.constant 0 : i32
    %c0_i32_0 = arith.constant 0 : i32
    return %arg0, %c0_i32 : i32, i32
  }
  func.func @transform_8(%arg0: i32) -> (i32, i32) {
    %c0_i32 = arith.constant 0 : i32
    %c0_i32_0 = arith.constant 0 : i32
    return %arg0, %c0_i32 : i32, i32
  }
  func.func @transform_9(%arg0: i32) -> (i32, i32) {
    %c0_i32 = arith.constant 0 : i32
    %c0_i32_0 = arith.constant 0 : i32
    return %arg0, %c0_i32 : i32, i32
  }
}

module attributes {stable_mosaic.version = 11 : i64} {
  func.func @_flash_attn_kernel(%arg0: i32, %arg1: i32, %arg2: memref<1xi32, #tpu.memory_space<smem>>, %arg3: memref<1xi32, #tpu.memory_space<smem>>, %arg4: memref<8x32xbf16, #tpu.memory_space<vmem>>, %arg5: memref<8x32xbf16, #tpu.memory_space<vmem>>, %arg6: memref<8x32xbf16, #tpu.memory_space<vmem>>, %arg7: memref<8x32xbf16, #tpu.memory_space<vmem>>, %arg8: memref<8x32xbf16, #tpu.memory_space<vmem>>, %arg9: memref<4x8x1xf32, #tpu.memory_space<vmem>>, %arg10: memref<4x8x1xf32, #tpu.memory_space<vmem>>, %arg11: memref<4x8x8xf32, #tpu.memory_space<vmem>>) attributes {dimension_semantics = [#tpu.dimension_semantics<parallel>, #tpu.dimension_semantics<arbitrary>], iteration_bounds = array<i64: 2, 1>, scalar_prefetch = 2 : i64, scratch_operands = 4 : i64, tpu.core_type = #tpu.core_type<tc>, window_params = [{transform_indices = @transform_0, window_bounds = array<i64: 8, 32>}, {transform_indices = @transform_1, window_bounds = array<i64: 8, 32>}, {transform_indices = @transform_2, window_bounds = array<i64: 8, 32>}, {transform_indices = @transform_3, window_bounds = array<i64: 8, 32>}]} {
    %0 = arith.index_cast %arg1 : i32 to index
    %1 = memref.load %arg2[%0] : memref<1xi32, #tpu.memory_space<smem>>
    %2 = arith.index_cast %arg1 : i32 to index
    %3 = memref.load %arg3[%2] : memref<1xi32, #tpu.memory_space<smem>>
    %c0_i32 = arith.constant 0 : i32
    %4 = arith.cmpi eq, %3, %c0_i32 : i32
    %5 = arith.extui %4 : i1 to i32
    %c0_i32_0 = arith.constant 0 : i32
    %6 = arith.cmpi ne, %5, %c0_i32_0 : i32
    scf.if %6 {
      %c0 = arith.constant 0 : index
      %c0_3 = arith.constant 0 : index
      %13 = vector.load %arg4[%c0, %c0_3] : memref<8x32xbf16, #tpu.memory_space<vmem>>, vector<8x32xbf16>
      %cst = arith.constant 3.535160e-01 : bf16
      %14 = vector.broadcast %cst : bf16 to vector<8x32xbf16>
      %15 = arith.mulf %13, %14 : vector<8x32xbf16>
      %c0_4 = arith.constant 0 : index
      %c0_5 = arith.constant 0 : index
      %16 = vector.load %arg8[%c0_4, %c0_5] : memref<8x32xbf16, #tpu.memory_space<vmem>>, vector<8x32xbf16>
      tpu.vector_store %arg8[%c0_4, %c0_5], %15 {strides = array<i32>} : memref<8x32xbf16, #tpu.memory_space<vmem>>, vector<8x32xbf16>,
      %cst_6 = arith.constant 0xFF800000 : f32
      %17 = vector.broadcast %cst_6 : f32 to vector<4x8x1xf32>
      %c0_7 = arith.constant 0 : index
      %c0_8 = arith.constant 0 : index
      %c0_9 = arith.constant 0 : index
      %18 = vector.load %arg9[%c0_7, %c0_8, %c0_9] : memref<4x8x1xf32, #tpu.memory_space<vmem>>, vector<4x8x1xf32>
      tpu.vector_store %arg9[%c0_7, %c0_8, %c0_9], %17 {strides = array<i32>} : memref<4x8x1xf32, #tpu.memory_space<vmem>>, vector<4x8x1xf32>,
      %cst_10 = arith.constant 0.000000e+00 : f32
      %19 = vector.broadcast %cst_10 : f32 to vector<4x8x1xf32>
      %c0_11 = arith.constant 0 : index
      %c0_12 = arith.constant 0 : index
      %c0_13 = arith.constant 0 : index
      %20 = vector.load %arg10[%c0_11, %c0_12, %c0_13] : memref<4x8x1xf32, #tpu.memory_space<vmem>>, vector<4x8x1xf32>
      tpu.vector_store %arg10[%c0_11, %c0_12, %c0_13], %19 {strides = array<i32>} : memref<4x8x1xf32, #tpu.memory_space<vmem>>, vector<4x8x1xf32>,
      %cst_14 = arith.constant 0.000000e+00 : f32
      %21 = vector.broadcast %cst_14 : f32 to vector<4x8x8xf32>
      %c0_15 = arith.constant 0 : index
      %c0_16 = arith.constant 0 : index
      %c0_17 = arith.constant 0 : index
      %22 = vector.load %arg11[%c0_15, %c0_16, %c0_17] : memref<4x8x8xf32, #tpu.memory_space<vmem>>, vector<4x8x8xf32>
      tpu.vector_store %arg11[%c0_15, %c0_16, %c0_17], %21 {strides = array<i32>} : memref<4x8x8xf32, #tpu.memory_space<vmem>>, vector<4x8x8xf32>,
    } else {
    }
    %7 = arith.cmpi slt, %3, %1 : i32
    %8 = arith.extui %7 : i1 to i32
    %c0_i32_1 = arith.constant 0 : i32
    %9 = arith.cmpi ne, %8, %c0_i32_1 : i32
    scf.if %9 {
      %c0 = arith.constant 0 : index
      %c0_3 = arith.constant 0 : index
      %13 = vector.load %arg5[%c0, %c0_3] : memref<8x32xbf16, #tpu.memory_space<vmem>>, vector<8x32xbf16>
      %c0_4 = arith.constant 0 : index
      %c0_5 = arith.constant 0 : index
      %14 = vector.load %arg6[%c0_4, %c0_5] : memref<8x32xbf16, #tpu.memory_space<vmem>>, vector<8x32xbf16>
      %c0_6 = arith.constant 0 : index
      %c0_7 = arith.constant 0 : index
      %15 = vector.load %arg8[%c0_6, %c0_7] : memref<8x32xbf16, #tpu.memory_space<vmem>>, vector<8x8xbf16>
      %16 = vector.extract_strided_slice %13 {offsets = [0, 0], sizes = [8, 8], strides = [1, 1]} : vector<8x32xbf16> to vector<8x8xbf16>
      "tpu.trace_start"() <{level = 10 : i32, message = "qd,kd->qk"}> : () -> ()
      %cst = arith.constant dense<0.000000e+00> : vector<8x8xf32>
      %17 = tpu.matmul %15, %16, %cst {dimension_numbers = #tpu.dot_dimension_numbers<[1], [1], [0], [0], [0, 0, 1, 0], [], []>} : vector<8x8xbf16>, vector<8x8xbf16>, vector<8x8xf32> -> vector<8x8xf32>
      "tpu.trace_stop"() : () -> ()
      %c0_8 = arith.constant 0 : index
      %c0_9 = arith.constant 0 : index
      %c0_10 = arith.constant 0 : index
      %18 = vector.load %arg9[%c0_8, %c0_9, %c0_10] : memref<4x8x1xf32, #tpu.memory_space<vmem>>, vector<1x8x1xf32>
      %19 = vector.shape_cast %18 : vector<1x8x1xf32> to vector<8x1xf32>
      %cst_11 = arith.constant dense<0xFF800000> : vector<8xf32>
      %20 = vector.multi_reduction <maximumf>, %17, %cst_11 [1] : vector<8x8xf32> to vector<8xf32>
      %21 = vector.shape_cast %20 : vector<8xf32> to vector<8x1xf32>
      %22 = arith.maximumf %19, %21 : vector<8x1xf32>
      %23 = arith.subf %19, %22 : vector<8x1xf32>
      %24 = math.exp %23 : vector<8x1xf32>
      %25 = vector.broadcast %22 : vector<8x1xf32> to vector<8x8xf32>
      %26 = arith.subf %17, %25 : vector<8x8xf32>
      %27 = math.exp %26 : vector<8x8xf32>
      %c0_12 = arith.constant 0 : index
      %c0_13 = arith.constant 0 : index
      %c0_14 = arith.constant 0 : index
      %28 = vector.load %arg10[%c0_12, %c0_13, %c0_14] : memref<4x8x1xf32, #tpu.memory_space<vmem>>, vector<1x8x1xf32>
      %29 = vector.shape_cast %28 : vector<1x8x1xf32> to vector<8x1xf32>
      %30 = arith.mulf %24, %29 : vector<8x1xf32>
      %cst_15 = arith.constant dense<0.000000e+00> : vector<8xf32>
      %31 = vector.multi_reduction <add>, %27, %cst_15 [1] : vector<8x8xf32> to vector<8xf32>
      %32 = vector.shape_cast %31 : vector<8xf32> to vector<8x1xf32>
      %33 = arith.addf %30, %32 : vector<8x1xf32>
      %c0_16 = arith.constant 0 : index
      %c0_17 = arith.constant 0 : index
      %c0_18 = arith.constant 0 : index
      %34 = vector.load %arg10[%c0_16, %c0_17, %c0_18] : memref<4x8x1xf32, #tpu.memory_space<vmem>>, vector<1x8x1xf32>
      %35 = vector.shape_cast %34 : vector<1x8x1xf32> to vector<8x1xf32>
      %36 = vector.shape_cast %33 : vector<8x1xf32> to vector<1x8x1xf32>
      tpu.vector_store %arg10[%c0_16, %c0_17, %c0_18], %36 {strides = array<i32>} : memref<4x8x1xf32, #tpu.memory_space<vmem>>, vector<1x8x1xf32>,
      %c0_19 = arith.constant 0 : index
      %c0_20 = arith.constant 0 : index
      %c0_21 = arith.constant 0 : index
      %37 = vector.load %arg11[%c0_19, %c0_20, %c0_21] : memref<4x8x8xf32, #tpu.memory_space<vmem>>, vector<1x8x8xf32>
      %38 = vector.shape_cast %37 : vector<1x8x8xf32> to vector<8x8xf32>
      %39 = vector.broadcast %24 : vector<8x1xf32> to vector<8x8xf32>
      %40 = arith.mulf %39, %38 : vector<8x8xf32>
      %41 = arith.truncf %27 : vector<8x8xf32> to vector<8x8xbf16>
      %42 = vector.extract_strided_slice %14 {offsets = [0, 0], sizes = [8, 8], strides = [1, 1]} : vector<8x32xbf16> to vector<8x8xbf16>
      "tpu.trace_start"() <{level = 10 : i32, message = "qk,kd->qd"}> : () -> ()
      %cst_22 = arith.constant dense<0.000000e+00> : vector<8x8xf32>
      %43 = tpu.matmul %41, %42, %cst_22 {dimension_numbers = #tpu.dot_dimension_numbers<[1], [0], [0], [1], [0, 0, 1, 1], [], []>} : vector<8x8xbf16>, vector<8x8xbf16>, vector<8x8xf32> -> vector<8x8xf32>
      "tpu.trace_stop"() : () -> ()
      %44 = arith.addf %40, %43 : vector<8x8xf32>
      %c0_23 = arith.constant 0 : index
      %c0_24 = arith.constant 0 : index
      %c0_25 = arith.constant 0 : index
      %45 = vector.load %arg11[%c0_23, %c0_24, %c0_25] : memref<4x8x8xf32, #tpu.memory_space<vmem>>, vector<1x8x8xf32>
      %46 = vector.shape_cast %45 : vector<1x8x8xf32> to vector<8x8xf32>
      %47 = vector.shape_cast %44 : vector<8x8xf32> to vector<1x8x8xf32>
      tpu.vector_store %arg11[%c0_23, %c0_24, %c0_25], %47 {strides = array<i32>} : memref<4x8x8xf32, #tpu.memory_space<vmem>>, vector<1x8x8xf32>,
      %c0_26 = arith.constant 0 : index
      %c0_27 = arith.constant 0 : index
      %c0_28 = arith.constant 0 : index
      %48 = vector.load %arg9[%c0_26, %c0_27, %c0_28] : memref<4x8x1xf32, #tpu.memory_space<vmem>>, vector<1x8x1xf32>
      %49 = vector.shape_cast %48 : vector<1x8x1xf32> to vector<8x1xf32>
      %50 = vector.shape_cast %22 : vector<8x1xf32> to vector<1x8x1xf32>
      tpu.vector_store %arg9[%c0_26, %c0_27, %c0_28], %50 {strides = array<i32>} : memref<4x8x1xf32, #tpu.memory_space<vmem>>, vector<1x8x1xf32>,
      %c0_29 = arith.constant 0 : index
      %c8 = arith.constant 8 : index
      %51 = vector.load %arg8[%c0_29, %c8] : memref<8x32xbf16, #tpu.memory_space<vmem>>, vector<8x8xbf16>
      %52 = vector.extract_strided_slice %13 {offsets = [0, 8], sizes = [8, 8], strides = [1, 1]} : vector<8x32xbf16> to vector<8x8xbf16>
      "tpu.trace_start"() <{level = 10 : i32, message = "qd,kd->qk"}> : () -> ()
      %cst_30 = arith.constant dense<0.000000e+00> : vector<8x8xf32>
      %53 = tpu.matmul %51, %52, %cst_30 {dimension_numbers = #tpu.dot_dimension_numbers<[1], [1], [0], [0], [0, 0, 1, 0], [], []>} : vector<8x8xbf16>, vector<8x8xbf16>, vector<8x8xf32> -> vector<8x8xf32>
      "tpu.trace_stop"() : () -> ()
      %c1 = arith.constant 1 : index
      %c0_31 = arith.constant 0 : index
      %c0_32 = arith.constant 0 : index
      %54 = vector.load %arg9[%c1, %c0_31, %c0_32] : memref<4x8x1xf32, #tpu.memory_space<vmem>>, vector<1x8x1xf32>
      %55 = vector.shape_cast %54 : vector<1x8x1xf32> to vector<8x1xf32>
      %cst_33 = arith.constant dense<0xFF800000> : vector<8xf32>
      %56 = vector.multi_reduction <maximumf>, %53, %cst_33 [1] : vector<8x8xf32> to vector<8xf32>
      %57 = vector.shape_cast %56 : vector<8xf32> to vector<8x1xf32>
      %58 = arith.maximumf %55, %57 : vector<8x1xf32>
      %59 = arith.subf %55, %58 : vector<8x1xf32>
      %60 = math.exp %59 : vector<8x1xf32>
      %61 = vector.broadcast %58 : vector<8x1xf32> to vector<8x8xf32>
      %62 = arith.subf %53, %61 : vector<8x8xf32>
      %63 = math.exp %62 : vector<8x8xf32>
      %c1_34 = arith.constant 1 : index
      %c0_35 = arith.constant 0 : index
      %c0_36 = arith.constant 0 : index
      %64 = vector.load %arg10[%c1_34, %c0_35, %c0_36] : memref<4x8x1xf32, #tpu.memory_space<vmem>>, vector<1x8x1xf32>
      %65 = vector.shape_cast %64 : vector<1x8x1xf32> to vector<8x1xf32>
      %66 = arith.mulf %60, %65 : vector<8x1xf32>
      %cst_37 = arith.constant dense<0.000000e+00> : vector<8xf32>
      %67 = vector.multi_reduction <add>, %63, %cst_37 [1] : vector<8x8xf32> to vector<8xf32>
      %68 = vector.shape_cast %67 : vector<8xf32> to vector<8x1xf32>
      %69 = arith.addf %66, %68 : vector<8x1xf32>
      %c1_38 = arith.constant 1 : index
      %c0_39 = arith.constant 0 : index
      %c0_40 = arith.constant 0 : index
      %70 = vector.load %arg10[%c1_38, %c0_39, %c0_40] : memref<4x8x1xf32, #tpu.memory_space<vmem>>, vector<1x8x1xf32>
      %71 = vector.shape_cast %70 : vector<1x8x1xf32> to vector<8x1xf32>
      %72 = vector.shape_cast %69 : vector<8x1xf32> to vector<1x8x1xf32>
      tpu.vector_store %arg10[%c1_38, %c0_39, %c0_40], %72 {strides = array<i32>} : memref<4x8x1xf32, #tpu.memory_space<vmem>>, vector<1x8x1xf32>,
      %c1_41 = arith.constant 1 : index
      %c0_42 = arith.constant 0 : index
      %c0_43 = arith.constant 0 : index
      %73 = vector.load %arg11[%c1_41, %c0_42, %c0_43] : memref<4x8x8xf32, #tpu.memory_space<vmem>>, vector<1x8x8xf32>
      %74 = vector.shape_cast %73 : vector<1x8x8xf32> to vector<8x8xf32>
      %75 = vector.broadcast %60 : vector<8x1xf32> to vector<8x8xf32>
      %76 = arith.mulf %75, %74 : vector<8x8xf32>
      %77 = arith.truncf %63 : vector<8x8xf32> to vector<8x8xbf16>
      %78 = vector.extract_strided_slice %14 {offsets = [0, 8], sizes = [8, 8], strides = [1, 1]} : vector<8x32xbf16> to vector<8x8xbf16>
      "tpu.trace_start"() <{level = 10 : i32, message = "qk,kd->qd"}> : () -> ()
      %cst_44 = arith.constant dense<0.000000e+00> : vector<8x8xf32>
      %79 = tpu.matmul %77, %78, %cst_44 {dimension_numbers = #tpu.dot_dimension_numbers<[1], [0], [0], [1], [0, 0, 1, 1], [], []>} : vector<8x8xbf16>, vector<8x8xbf16>, vector<8x8xf32> -> vector<8x8xf32>
      "tpu.trace_stop"() : () -> ()
      %80 = arith.addf %76, %79 : vector<8x8xf32>
      %c1_45 = arith.constant 1 : index
      %c0_46 = arith.constant 0 : index
      %c0_47 = arith.constant 0 : index
      %81 = vector.load %arg11[%c1_45, %c0_46, %c0_47] : memref<4x8x8xf32, #tpu.memory_space<vmem>>, vector<1x8x8xf32>
      %82 = vector.shape_cast %81 : vector<1x8x8xf32> to vector<8x8xf32>
      %83 = vector.shape_cast %80 : vector<8x8xf32> to vector<1x8x8xf32>
      tpu.vector_store %arg11[%c1_45, %c0_46, %c0_47], %83 {strides = array<i32>} : memref<4x8x8xf32, #tpu.memory_space<vmem>>, vector<1x8x8xf32>,
      %c1_48 = arith.constant 1 : index
      %c0_49 = arith.constant 0 : index
      %c0_50 = arith.constant 0 : index
      %84 = vector.load %arg9[%c1_48, %c0_49, %c0_50] : memref<4x8x1xf32, #tpu.memory_space<vmem>>, vector<1x8x1xf32>
      %85 = vector.shape_cast %84 : vector<1x8x1xf32> to vector<8x1xf32>
      %86 = vector.shape_cast %58 : vector<8x1xf32> to vector<1x8x1xf32>
      tpu.vector_store %arg9[%c1_48, %c0_49, %c0_50], %86 {strides = array<i32>} : memref<4x8x1xf32, #tpu.memory_space<vmem>>, vector<1x8x1xf32>,
      %c0_51 = arith.constant 0 : index
      %c16 = arith.constant 16 : index
      %87 = vector.load %arg8[%c0_51, %c16] : memref<8x32xbf16, #tpu.memory_space<vmem>>, vector<8x8xbf16>
      %88 = vector.extract_strided_slice %13 {offsets = [0, 16], sizes = [8, 8], strides = [1, 1]} : vector<8x32xbf16> to vector<8x8xbf16>
      "tpu.trace_start"() <{level = 10 : i32, message = "qd,kd->qk"}> : () -> ()
      %cst_52 = arith.constant dense<0.000000e+00> : vector<8x8xf32>
      %89 = tpu.matmul %87, %88, %cst_52 {dimension_numbers = #tpu.dot_dimension_numbers<[1], [1], [0], [0], [0, 0, 1, 0], [], []>} : vector<8x8xbf16>, vector<8x8xbf16>, vector<8x8xf32> -> vector<8x8xf32>
      "tpu.trace_stop"() : () -> ()
      %c2 = arith.constant 2 : index
      %c0_53 = arith.constant 0 : index
      %c0_54 = arith.constant 0 : index
      %90 = vector.load %arg9[%c2, %c0_53, %c0_54] : memref<4x8x1xf32, #tpu.memory_space<vmem>>, vector<1x8x1xf32>
      %91 = vector.shape_cast %90 : vector<1x8x1xf32> to vector<8x1xf32>
      %cst_55 = arith.constant dense<0xFF800000> : vector<8xf32>
      %92 = vector.multi_reduction <maximumf>, %89, %cst_55 [1] : vector<8x8xf32> to vector<8xf32>
      %93 = vector.shape_cast %92 : vector<8xf32> to vector<8x1xf32>
      %94 = arith.maximumf %91, %93 : vector<8x1xf32>
      %95 = arith.subf %91, %94 : vector<8x1xf32>
      %96 = math.exp %95 : vector<8x1xf32>
      %97 = vector.broadcast %94 : vector<8x1xf32> to vector<8x8xf32>
      %98 = arith.subf %89, %97 : vector<8x8xf32>
      %99 = math.exp %98 : vector<8x8xf32>
      %c2_56 = arith.constant 2 : index
      %c0_57 = arith.constant 0 : index
      %c0_58 = arith.constant 0 : index
      %100 = vector.load %arg10[%c2_56, %c0_57, %c0_58] : memref<4x8x1xf32, #tpu.memory_space<vmem>>, vector<1x8x1xf32>
      %101 = vector.shape_cast %100 : vector<1x8x1xf32> to vector<8x1xf32>
      %102 = arith.mulf %96, %101 : vector<8x1xf32>
      %cst_59 = arith.constant dense<0.000000e+00> : vector<8xf32>
      %103 = vector.multi_reduction <add>, %99, %cst_59 [1] : vector<8x8xf32> to vector<8xf32>
      %104 = vector.shape_cast %103 : vector<8xf32> to vector<8x1xf32>
      %105 = arith.addf %102, %104 : vector<8x1xf32>
      %c2_60 = arith.constant 2 : index
      %c0_61 = arith.constant 0 : index
      %c0_62 = arith.constant 0 : index
      %106 = vector.load %arg10[%c2_60, %c0_61, %c0_62] : memref<4x8x1xf32, #tpu.memory_space<vmem>>, vector<1x8x1xf32>
      %107 = vector.shape_cast %106 : vector<1x8x1xf32> to vector<8x1xf32>
      %108 = vector.shape_cast %105 : vector<8x1xf32> to vector<1x8x1xf32>
      tpu.vector_store %arg10[%c2_60, %c0_61, %c0_62], %108 {strides = array<i32>} : memref<4x8x1xf32, #tpu.memory_space<vmem>>, vector<1x8x1xf32>,
      %c2_63 = arith.constant 2 : index
      %c0_64 = arith.constant 0 : index
      %c0_65 = arith.constant 0 : index
      %109 = vector.load %arg11[%c2_63, %c0_64, %c0_65] : memref<4x8x8xf32, #tpu.memory_space<vmem>>, vector<1x8x8xf32>
      %110 = vector.shape_cast %109 : vector<1x8x8xf32> to vector<8x8xf32>
      %111 = vector.broadcast %96 : vector<8x1xf32> to vector<8x8xf32>
      %112 = arith.mulf %111, %110 : vector<8x8xf32>
      %113 = arith.truncf %99 : vector<8x8xf32> to vector<8x8xbf16>
      %114 = vector.extract_strided_slice %14 {offsets = [0, 16], sizes = [8, 8], strides = [1, 1]} : vector<8x32xbf16> to vector<8x8xbf16>
      "tpu.trace_start"() <{level = 10 : i32, message = "qk,kd->qd"}> : () -> ()
      %cst_66 = arith.constant dense<0.000000e+00> : vector<8x8xf32>
      %115 = tpu.matmul %113, %114, %cst_66 {dimension_numbers = #tpu.dot_dimension_numbers<[1], [0], [0], [1], [0, 0, 1, 1], [], []>} : vector<8x8xbf16>, vector<8x8xbf16>, vector<8x8xf32> -> vector<8x8xf32>
      "tpu.trace_stop"() : () -> ()
      %116 = arith.addf %112, %115 : vector<8x8xf32>
      %c2_67 = arith.constant 2 : index
      %c0_68 = arith.constant 0 : index
      %c0_69 = arith.constant 0 : index
      %117 = vector.load %arg11[%c2_67, %c0_68, %c0_69] : memref<4x8x8xf32, #tpu.memory_space<vmem>>, vector<1x8x8xf32>
      %118 = vector.shape_cast %117 : vector<1x8x8xf32> to vector<8x8xf32>
      %119 = vector.shape_cast %116 : vector<8x8xf32> to vector<1x8x8xf32>
      tpu.vector_store %arg11[%c2_67, %c0_68, %c0_69], %119 {strides = array<i32>} : memref<4x8x8xf32, #tpu.memory_space<vmem>>, vector<1x8x8xf32>,
      %c2_70 = arith.constant 2 : index
      %c0_71 = arith.constant 0 : index
      %c0_72 = arith.constant 0 : index
      %120 = vector.load %arg9[%c2_70, %c0_71, %c0_72] : memref<4x8x1xf32, #tpu.memory_space<vmem>>, vector<1x8x1xf32>
      %121 = vector.shape_cast %120 : vector<1x8x1xf32> to vector<8x1xf32>
      %122 = vector.shape_cast %94 : vector<8x1xf32> to vector<1x8x1xf32>
      tpu.vector_store %arg9[%c2_70, %c0_71, %c0_72], %122 {strides = array<i32>} : memref<4x8x1xf32, #tpu.memory_space<vmem>>, vector<1x8x1xf32>,
      %c0_73 = arith.constant 0 : index
      %c24 = arith.constant 24 : index
      %123 = vector.load %arg8[%c0_73, %c24] : memref<8x32xbf16, #tpu.memory_space<vmem>>, vector<8x8xbf16>
      %124 = vector.extract_strided_slice %13 {offsets = [0, 24], sizes = [8, 8], strides = [1, 1]} : vector<8x32xbf16> to vector<8x8xbf16>
      "tpu.trace_start"() <{level = 10 : i32, message = "qd,kd->qk"}> : () -> ()
      %cst_74 = arith.constant dense<0.000000e+00> : vector<8x8xf32>
      %125 = tpu.matmul %123, %124, %cst_74 {dimension_numbers = #tpu.dot_dimension_numbers<[1], [1], [0], [0], [0, 0, 1, 0], [], []>} : vector<8x8xbf16>, vector<8x8xbf16>, vector<8x8xf32> -> vector<8x8xf32>
      "tpu.trace_stop"() : () -> ()
      %c3 = arith.constant 3 : index
      %c0_75 = arith.constant 0 : index
      %c0_76 = arith.constant 0 : index
      %126 = vector.load %arg9[%c3, %c0_75, %c0_76] : memref<4x8x1xf32, #tpu.memory_space<vmem>>, vector<1x8x1xf32>
      %127 = vector.shape_cast %126 : vector<1x8x1xf32> to vector<8x1xf32>
      %cst_77 = arith.constant dense<0xFF800000> : vector<8xf32>
      %128 = vector.multi_reduction <maximumf>, %125, %cst_77 [1] : vector<8x8xf32> to vector<8xf32>
      %129 = vector.shape_cast %128 : vector<8xf32> to vector<8x1xf32>
      %130 = arith.maximumf %127, %129 : vector<8x1xf32>
      %131 = arith.subf %127, %130 : vector<8x1xf32>
      %132 = math.exp %131 : vector<8x1xf32>
      %133 = vector.broadcast %130 : vector<8x1xf32> to vector<8x8xf32>
      %134 = arith.subf %125, %133 : vector<8x8xf32>
      %135 = math.exp %134 : vector<8x8xf32>
      %c3_78 = arith.constant 3 : index
      %c0_79 = arith.constant 0 : index
      %c0_80 = arith.constant 0 : index
      %136 = vector.load %arg10[%c3_78, %c0_79, %c0_80] : memref<4x8x1xf32, #tpu.memory_space<vmem>>, vector<1x8x1xf32>
      %137 = vector.shape_cast %136 : vector<1x8x1xf32> to vector<8x1xf32>
      %138 = arith.mulf %132, %137 : vector<8x1xf32>
      %cst_81 = arith.constant dense<0.000000e+00> : vector<8xf32>
      %139 = vector.multi_reduction <add>, %135, %cst_81 [1] : vector<8x8xf32> to vector<8xf32>
      %140 = vector.shape_cast %139 : vector<8xf32> to vector<8x1xf32>
      %141 = arith.addf %138, %140 : vector<8x1xf32>
      %c3_82 = arith.constant 3 : index
      %c0_83 = arith.constant 0 : index
      %c0_84 = arith.constant 0 : index
      %142 = vector.load %arg10[%c3_82, %c0_83, %c0_84] : memref<4x8x1xf32, #tpu.memory_space<vmem>>, vector<1x8x1xf32>
      %143 = vector.shape_cast %142 : vector<1x8x1xf32> to vector<8x1xf32>
      %144 = vector.shape_cast %141 : vector<8x1xf32> to vector<1x8x1xf32>
      tpu.vector_store %arg10[%c3_82, %c0_83, %c0_84], %144 {strides = array<i32>} : memref<4x8x1xf32, #tpu.memory_space<vmem>>, vector<1x8x1xf32>,
      %c3_85 = arith.constant 3 : index
      %c0_86 = arith.constant 0 : index
      %c0_87 = arith.constant 0 : index
      %145 = vector.load %arg11[%c3_85, %c0_86, %c0_87] : memref<4x8x8xf32, #tpu.memory_space<vmem>>, vector<1x8x8xf32>
      %146 = vector.shape_cast %145 : vector<1x8x8xf32> to vector<8x8xf32>
      %147 = vector.broadcast %132 : vector<8x1xf32> to vector<8x8xf32>
      %148 = arith.mulf %147, %146 : vector<8x8xf32>
      %149 = arith.truncf %135 : vector<8x8xf32> to vector<8x8xbf16>
      %150 = vector.extract_strided_slice %14 {offsets = [0, 24], sizes = [8, 8], strides = [1, 1]} : vector<8x32xbf16> to vector<8x8xbf16>
      "tpu.trace_start"() <{level = 10 : i32, message = "qk,kd->qd"}> : () -> ()
      %cst_88 = arith.constant dense<0.000000e+00> : vector<8x8xf32>
      %151 = tpu.matmul %149, %150, %cst_88 {dimension_numbers = #tpu.dot_dimension_numbers<[1], [0], [0], [1], [0, 0, 1, 1], [], []>} : vector<8x8xbf16>, vector<8x8xbf16>, vector<8x8xf32> -> vector<8x8xf32>
      "tpu.trace_stop"() : () -> ()
      %152 = arith.addf %148, %151 : vector<8x8xf32>
      %c3_89 = arith.constant 3 : index
      %c0_90 = arith.constant 0 : index
      %c0_91 = arith.constant 0 : index
      %153 = vector.load %arg11[%c3_89, %c0_90, %c0_91] : memref<4x8x8xf32, #tpu.memory_space<vmem>>, vector<1x8x8xf32>
      %154 = vector.shape_cast %153 : vector<1x8x8xf32> to vector<8x8xf32>
      %155 = vector.shape_cast %152 : vector<8x8xf32> to vector<1x8x8xf32>
      tpu.vector_store %arg11[%c3_89, %c0_90, %c0_91], %155 {strides = array<i32>} : memref<4x8x8xf32, #tpu.memory_space<vmem>>, vector<1x8x8xf32>,
      %c3_92 = arith.constant 3 : index
      %c0_93 = arith.constant 0 : index
      %c0_94 = arith.constant 0 : index
      %156 = vector.load %arg9[%c3_92, %c0_93, %c0_94] : memref<4x8x1xf32, #tpu.memory_space<vmem>>, vector<1x8x1xf32>
      %157 = vector.shape_cast %156 : vector<1x8x1xf32> to vector<8x1xf32>
      %158 = vector.shape_cast %130 : vector<8x1xf32> to vector<1x8x1xf32>
      tpu.vector_store %arg9[%c3_92, %c0_93, %c0_94], %158 {strides = array<i32>} : memref<4x8x1xf32, #tpu.memory_space<vmem>>, vector<1x8x1xf32>,
    } else {
    }
    %10 = arith.cmpi eq, %3, %1 : i32
    %11 = arith.extui %10 : i1 to i32
    %c0_i32_2 = arith.constant 0 : i32
    %12 = arith.cmpi ne, %11, %c0_i32_2 : i32
    scf.if %12 {
      %c0 = arith.constant 0 : index
      %c0_3 = arith.constant 0 : index
      %13 = vector.load %arg5[%c0, %c0_3] : memref<8x32xbf16, #tpu.memory_space<vmem>>, vector<8x32xbf16>
      %c0_4 = arith.constant 0 : index
      %c0_5 = arith.constant 0 : index
      %14 = vector.load %arg6[%c0_4, %c0_5] : memref<8x32xbf16, #tpu.memory_space<vmem>>, vector<8x32xbf16>
      %c0_6 = arith.constant 0 : index
      %c0_7 = arith.constant 0 : index
      %15 = vector.load %arg8[%c0_6, %c0_7] : memref<8x32xbf16, #tpu.memory_space<vmem>>, vector<8x8xbf16>
      %16 = vector.extract_strided_slice %13 {offsets = [0, 0], sizes = [8, 8], strides = [1, 1]} : vector<8x32xbf16> to vector<8x8xbf16>
      "tpu.trace_start"() <{level = 10 : i32, message = "qd,kd->qk"}> : () -> ()
      %cst = arith.constant dense<0.000000e+00> : vector<8x8xf32>
      %17 = tpu.matmul %15, %16, %cst {dimension_numbers = #tpu.dot_dimension_numbers<[1], [1], [0], [0], [0, 0, 1, 0], [], []>} : vector<8x8xbf16>, vector<8x8xbf16>, vector<8x8xf32> -> vector<8x8xf32>
      "tpu.trace_stop"() : () -> ()
      %18 = tpu.iota {dimensions = array<i32: 0>} : vector<8x8xi32>
      %19 = tpu.iota {dimensions = array<i32: 1>} : vector<8x8xi32>
      %20 = arith.cmpi sle, %19, %18 : vector<8x8xi32>
      %cst_8 = arith.constant 0xFF800000 : f32
      %21 = vector.broadcast %cst_8 : f32 to vector<8x8xf32>
      %22 = arith.select %20, %17, %21 : vector<8x8xi1>, vector<8x8xf32>
      %c0_9 = arith.constant 0 : index
      %c0_10 = arith.constant 0 : index
      %c0_11 = arith.constant 0 : index
      %23 = vector.load %arg9[%c0_9, %c0_10, %c0_11] : memref<4x8x1xf32, #tpu.memory_space<vmem>>, vector<1x8x1xf32>
      %24 = vector.shape_cast %23 : vector<1x8x1xf32> to vector<8x1xf32>
      %cst_12 = arith.constant dense<0xFF800000> : vector<8xf32>
      %25 = vector.multi_reduction <maximumf>, %22, %cst_12 [1] : vector<8x8xf32> to vector<8xf32>
      %26 = vector.shape_cast %25 : vector<8xf32> to vector<8x1xf32>
      %27 = arith.maximumf %24, %26 : vector<8x1xf32>
      %28 = arith.subf %24, %27 : vector<8x1xf32>
      %29 = math.exp %28 : vector<8x1xf32>
      %30 = vector.broadcast %27 : vector<8x1xf32> to vector<8x8xf32>
      %31 = arith.subf %22, %30 : vector<8x8xf32>
      %32 = math.exp %31 : vector<8x8xf32>
      %c0_13 = arith.constant 0 : index
      %c0_14 = arith.constant 0 : index
      %c0_15 = arith.constant 0 : index
      %33 = vector.load %arg10[%c0_13, %c0_14, %c0_15] : memref<4x8x1xf32, #tpu.memory_space<vmem>>, vector<1x8x1xf32>
      %34 = vector.shape_cast %33 : vector<1x8x1xf32> to vector<8x1xf32>
      %35 = arith.mulf %29, %34 : vector<8x1xf32>
      %cst_16 = arith.constant dense<0.000000e+00> : vector<8xf32>
      %36 = vector.multi_reduction <add>, %32, %cst_16 [1] : vector<8x8xf32> to vector<8xf32>
      %37 = vector.shape_cast %36 : vector<8xf32> to vector<8x1xf32>
      %38 = arith.addf %35, %37 : vector<8x1xf32>
      %c0_17 = arith.constant 0 : index
      %c0_18 = arith.constant 0 : index
      %c0_19 = arith.constant 0 : index
      %39 = vector.load %arg10[%c0_17, %c0_18, %c0_19] : memref<4x8x1xf32, #tpu.memory_space<vmem>>, vector<1x8x1xf32>
      %40 = vector.shape_cast %39 : vector<1x8x1xf32> to vector<8x1xf32>
      %41 = vector.shape_cast %38 : vector<8x1xf32> to vector<1x8x1xf32>
      tpu.vector_store %arg10[%c0_17, %c0_18, %c0_19], %41 {strides = array<i32>} : memref<4x8x1xf32, #tpu.memory_space<vmem>>, vector<1x8x1xf32>,
      %c0_20 = arith.constant 0 : index
      %c0_21 = arith.constant 0 : index
      %c0_22 = arith.constant 0 : index
      %42 = vector.load %arg11[%c0_20, %c0_21, %c0_22] : memref<4x8x8xf32, #tpu.memory_space<vmem>>, vector<1x8x8xf32>
      %43 = vector.shape_cast %42 : vector<1x8x8xf32> to vector<8x8xf32>
      %44 = vector.broadcast %29 : vector<8x1xf32> to vector<8x8xf32>
      %45 = arith.mulf %44, %43 : vector<8x8xf32>
      %46 = arith.truncf %32 : vector<8x8xf32> to vector<8x8xbf16>
      %47 = vector.extract_strided_slice %14 {offsets = [0, 0], sizes = [8, 8], strides = [1, 1]} : vector<8x32xbf16> to vector<8x8xbf16>
      "tpu.trace_start"() <{level = 10 : i32, message = "qk,kd->qd"}> : () -> ()
      %cst_23 = arith.constant dense<0.000000e+00> : vector<8x8xf32>
      %48 = tpu.matmul %46, %47, %cst_23 {dimension_numbers = #tpu.dot_dimension_numbers<[1], [0], [0], [1], [0, 0, 1, 1], [], []>} : vector<8x8xbf16>, vector<8x8xbf16>, vector<8x8xf32> -> vector<8x8xf32>
      "tpu.trace_stop"() : () -> ()
      %49 = arith.addf %45, %48 : vector<8x8xf32>
      %c0_24 = arith.constant 0 : index
      %c0_25 = arith.constant 0 : index
      %c0_26 = arith.constant 0 : index
      %50 = vector.load %arg11[%c0_24, %c0_25, %c0_26] : memref<4x8x8xf32, #tpu.memory_space<vmem>>, vector<1x8x8xf32>
      %51 = vector.shape_cast %50 : vector<1x8x8xf32> to vector<8x8xf32>
      %52 = vector.shape_cast %49 : vector<8x8xf32> to vector<1x8x8xf32>
      tpu.vector_store %arg11[%c0_24, %c0_25, %c0_26], %52 {strides = array<i32>} : memref<4x8x8xf32, #tpu.memory_space<vmem>>, vector<1x8x8xf32>,
      %c0_27 = arith.constant 0 : index
      %c0_28 = arith.constant 0 : index
      %c0_29 = arith.constant 0 : index
      %53 = vector.load %arg9[%c0_27, %c0_28, %c0_29] : memref<4x8x1xf32, #tpu.memory_space<vmem>>, vector<1x8x1xf32>
      %54 = vector.shape_cast %53 : vector<1x8x1xf32> to vector<8x1xf32>
      %55 = vector.shape_cast %27 : vector<8x1xf32> to vector<1x8x1xf32>
      tpu.vector_store %arg9[%c0_27, %c0_28, %c0_29], %55 {strides = array<i32>} : memref<4x8x1xf32, #tpu.memory_space<vmem>>, vector<1x8x1xf32>,
      %c0_30 = arith.constant 0 : index
      %c8 = arith.constant 8 : index
      %56 = vector.load %arg8[%c0_30, %c8] : memref<8x32xbf16, #tpu.memory_space<vmem>>, vector<8x8xbf16>
      %57 = vector.extract_strided_slice %13 {offsets = [0, 8], sizes = [8, 8], strides = [1, 1]} : vector<8x32xbf16> to vector<8x8xbf16>
      "tpu.trace_start"() <{level = 10 : i32, message = "qd,kd->qk"}> : () -> ()
      %cst_31 = arith.constant dense<0.000000e+00> : vector<8x8xf32>
      %58 = tpu.matmul %56, %57, %cst_31 {dimension_numbers = #tpu.dot_dimension_numbers<[1], [1], [0], [0], [0, 0, 1, 0], [], []>} : vector<8x8xbf16>, vector<8x8xbf16>, vector<8x8xf32> -> vector<8x8xf32>
      "tpu.trace_stop"() : () -> ()
      %59 = tpu.iota {dimensions = array<i32: 0>} : vector<8x8xi32>
      %60 = tpu.iota {dimensions = array<i32: 1>} : vector<8x8xi32>
      %61 = arith.cmpi sle, %60, %59 : vector<8x8xi32>
      %cst_32 = arith.constant 0xFF800000 : f32
      %62 = vector.broadcast %cst_32 : f32 to vector<8x8xf32>
      %63 = arith.select %61, %58, %62 : vector<8x8xi1>, vector<8x8xf32>
      %c1 = arith.constant 1 : index
      %c0_33 = arith.constant 0 : index
      %c0_34 = arith.constant 0 : index
      %64 = vector.load %arg9[%c1, %c0_33, %c0_34] : memref<4x8x1xf32, #tpu.memory_space<vmem>>, vector<1x8x1xf32>
      %65 = vector.shape_cast %64 : vector<1x8x1xf32> to vector<8x1xf32>
      %cst_35 = arith.constant dense<0xFF800000> : vector<8xf32>
      %66 = vector.multi_reduction <maximumf>, %63, %cst_35 [1] : vector<8x8xf32> to vector<8xf32>
      %67 = vector.shape_cast %66 : vector<8xf32> to vector<8x1xf32>
      %68 = arith.maximumf %65, %67 : vector<8x1xf32>
      %69 = arith.subf %65, %68 : vector<8x1xf32>
      %70 = math.exp %69 : vector<8x1xf32>
      %71 = vector.broadcast %68 : vector<8x1xf32> to vector<8x8xf32>
      %72 = arith.subf %63, %71 : vector<8x8xf32>
      %73 = math.exp %72 : vector<8x8xf32>
      %c1_36 = arith.constant 1 : index
      %c0_37 = arith.constant 0 : index
      %c0_38 = arith.constant 0 : index
      %74 = vector.load %arg10[%c1_36, %c0_37, %c0_38] : memref<4x8x1xf32, #tpu.memory_space<vmem>>, vector<1x8x1xf32>
      %75 = vector.shape_cast %74 : vector<1x8x1xf32> to vector<8x1xf32>
      %76 = arith.mulf %70, %75 : vector<8x1xf32>
      %cst_39 = arith.constant dense<0.000000e+00> : vector<8xf32>
      %77 = vector.multi_reduction <add>, %73, %cst_39 [1] : vector<8x8xf32> to vector<8xf32>
      %78 = vector.shape_cast %77 : vector<8xf32> to vector<8x1xf32>
      %79 = arith.addf %76, %78 : vector<8x1xf32>
      %c1_40 = arith.constant 1 : index
      %c0_41 = arith.constant 0 : index
      %c0_42 = arith.constant 0 : index
      %80 = vector.load %arg10[%c1_40, %c0_41, %c0_42] : memref<4x8x1xf32, #tpu.memory_space<vmem>>, vector<1x8x1xf32>
      %81 = vector.shape_cast %80 : vector<1x8x1xf32> to vector<8x1xf32>
      %82 = vector.shape_cast %79 : vector<8x1xf32> to vector<1x8x1xf32>
      tpu.vector_store %arg10[%c1_40, %c0_41, %c0_42], %82 {strides = array<i32>} : memref<4x8x1xf32, #tpu.memory_space<vmem>>, vector<1x8x1xf32>,
      %c1_43 = arith.constant 1 : index
      %c0_44 = arith.constant 0 : index
      %c0_45 = arith.constant 0 : index
      %83 = vector.load %arg11[%c1_43, %c0_44, %c0_45] : memref<4x8x8xf32, #tpu.memory_space<vmem>>, vector<1x8x8xf32>
      %84 = vector.shape_cast %83 : vector<1x8x8xf32> to vector<8x8xf32>
      %85 = vector.broadcast %70 : vector<8x1xf32> to vector<8x8xf32>
      %86 = arith.mulf %85, %84 : vector<8x8xf32>
      %87 = arith.truncf %73 : vector<8x8xf32> to vector<8x8xbf16>
      %88 = vector.extract_strided_slice %14 {offsets = [0, 8], sizes = [8, 8], strides = [1, 1]} : vector<8x32xbf16> to vector<8x8xbf16>
      "tpu.trace_start"() <{level = 10 : i32, message = "qk,kd->qd"}> : () -> ()
      %cst_46 = arith.constant dense<0.000000e+00> : vector<8x8xf32>
      %89 = tpu.matmul %87, %88, %cst_46 {dimension_numbers = #tpu.dot_dimension_numbers<[1], [0], [0], [1], [0, 0, 1, 1], [], []>} : vector<8x8xbf16>, vector<8x8xbf16>, vector<8x8xf32> -> vector<8x8xf32>
      "tpu.trace_stop"() : () -> ()
      %90 = arith.addf %86, %89 : vector<8x8xf32>
      %c1_47 = arith.constant 1 : index
      %c0_48 = arith.constant 0 : index
      %c0_49 = arith.constant 0 : index
      %91 = vector.load %arg11[%c1_47, %c0_48, %c0_49] : memref<4x8x8xf32, #tpu.memory_space<vmem>>, vector<1x8x8xf32>
      %92 = vector.shape_cast %91 : vector<1x8x8xf32> to vector<8x8xf32>
      %93 = vector.shape_cast %90 : vector<8x8xf32> to vector<1x8x8xf32>
      tpu.vector_store %arg11[%c1_47, %c0_48, %c0_49], %93 {strides = array<i32>} : memref<4x8x8xf32, #tpu.memory_space<vmem>>, vector<1x8x8xf32>,
      %c1_50 = arith.constant 1 : index
      %c0_51 = arith.constant 0 : index
      %c0_52 = arith.constant 0 : index
      %94 = vector.load %arg9[%c1_50, %c0_51, %c0_52] : memref<4x8x1xf32, #tpu.memory_space<vmem>>, vector<1x8x1xf32>
      %95 = vector.shape_cast %94 : vector<1x8x1xf32> to vector<8x1xf32>
      %96 = vector.shape_cast %68 : vector<8x1xf32> to vector<1x8x1xf32>
      tpu.vector_store %arg9[%c1_50, %c0_51, %c0_52], %96 {strides = array<i32>} : memref<4x8x1xf32, #tpu.memory_space<vmem>>, vector<1x8x1xf32>,
      %c0_53 = arith.constant 0 : index
      %c16 = arith.constant 16 : index
      %97 = vector.load %arg8[%c0_53, %c16] : memref<8x32xbf16, #tpu.memory_space<vmem>>, vector<8x8xbf16>
      %98 = vector.extract_strided_slice %13 {offsets = [0, 16], sizes = [8, 8], strides = [1, 1]} : vector<8x32xbf16> to vector<8x8xbf16>
      "tpu.trace_start"() <{level = 10 : i32, message = "qd,kd->qk"}> : () -> ()
      %cst_54 = arith.constant dense<0.000000e+00> : vector<8x8xf32>
      %99 = tpu.matmul %97, %98, %cst_54 {dimension_numbers = #tpu.dot_dimension_numbers<[1], [1], [0], [0], [0, 0, 1, 0], [], []>} : vector<8x8xbf16>, vector<8x8xbf16>, vector<8x8xf32> -> vector<8x8xf32>
      "tpu.trace_stop"() : () -> ()
      %100 = tpu.iota {dimensions = array<i32: 0>} : vector<8x8xi32>
      %101 = tpu.iota {dimensions = array<i32: 1>} : vector<8x8xi32>
      %102 = arith.cmpi sle, %101, %100 : vector<8x8xi32>
      %cst_55 = arith.constant 0xFF800000 : f32
      %103 = vector.broadcast %cst_55 : f32 to vector<8x8xf32>
      %104 = arith.select %102, %99, %103 : vector<8x8xi1>, vector<8x8xf32>
      %c2 = arith.constant 2 : index
      %c0_56 = arith.constant 0 : index
      %c0_57 = arith.constant 0 : index
      %105 = vector.load %arg9[%c2, %c0_56, %c0_57] : memref<4x8x1xf32, #tpu.memory_space<vmem>>, vector<1x8x1xf32>
      %106 = vector.shape_cast %105 : vector<1x8x1xf32> to vector<8x1xf32>
      %cst_58 = arith.constant dense<0xFF800000> : vector<8xf32>
      %107 = vector.multi_reduction <maximumf>, %104, %cst_58 [1] : vector<8x8xf32> to vector<8xf32>
      %108 = vector.shape_cast %107 : vector<8xf32> to vector<8x1xf32>
      %109 = arith.maximumf %106, %108 : vector<8x1xf32>
      %110 = arith.subf %106, %109 : vector<8x1xf32>
      %111 = math.exp %110 : vector<8x1xf32>
      %112 = vector.broadcast %109 : vector<8x1xf32> to vector<8x8xf32>
      %113 = arith.subf %104, %112 : vector<8x8xf32>
      %114 = math.exp %113 : vector<8x8xf32>
      %c2_59 = arith.constant 2 : index
      %c0_60 = arith.constant 0 : index
      %c0_61 = arith.constant 0 : index
      %115 = vector.load %arg10[%c2_59, %c0_60, %c0_61] : memref<4x8x1xf32, #tpu.memory_space<vmem>>, vector<1x8x1xf32>
      %116 = vector.shape_cast %115 : vector<1x8x1xf32> to vector<8x1xf32>
      %117 = arith.mulf %111, %116 : vector<8x1xf32>
      %cst_62 = arith.constant dense<0.000000e+00> : vector<8xf32>
      %118 = vector.multi_reduction <add>, %114, %cst_62 [1] : vector<8x8xf32> to vector<8xf32>
      %119 = vector.shape_cast %118 : vector<8xf32> to vector<8x1xf32>
      %120 = arith.addf %117, %119 : vector<8x1xf32>
      %c2_63 = arith.constant 2 : index
      %c0_64 = arith.constant 0 : index
      %c0_65 = arith.constant 0 : index
      %121 = vector.load %arg10[%c2_63, %c0_64, %c0_65] : memref<4x8x1xf32, #tpu.memory_space<vmem>>, vector<1x8x1xf32>
      %122 = vector.shape_cast %121 : vector<1x8x1xf32> to vector<8x1xf32>
      %123 = vector.shape_cast %120 : vector<8x1xf32> to vector<1x8x1xf32>
      tpu.vector_store %arg10[%c2_63, %c0_64, %c0_65], %123 {strides = array<i32>} : memref<4x8x1xf32, #tpu.memory_space<vmem>>, vector<1x8x1xf32>,
      %c2_66 = arith.constant 2 : index
      %c0_67 = arith.constant 0 : index
      %c0_68 = arith.constant 0 : index
      %124 = vector.load %arg11[%c2_66, %c0_67, %c0_68] : memref<4x8x8xf32, #tpu.memory_space<vmem>>, vector<1x8x8xf32>
      %125 = vector.shape_cast %124 : vector<1x8x8xf32> to vector<8x8xf32>
      %126 = vector.broadcast %111 : vector<8x1xf32> to vector<8x8xf32>
      %127 = arith.mulf %126, %125 : vector<8x8xf32>
      %128 = arith.truncf %114 : vector<8x8xf32> to vector<8x8xbf16>
      %129 = vector.extract_strided_slice %14 {offsets = [0, 16], sizes = [8, 8], strides = [1, 1]} : vector<8x32xbf16> to vector<8x8xbf16>
      "tpu.trace_start"() <{level = 10 : i32, message = "qk,kd->qd"}> : () -> ()
      %cst_69 = arith.constant dense<0.000000e+00> : vector<8x8xf32>
      %130 = tpu.matmul %128, %129, %cst_69 {dimension_numbers = #tpu.dot_dimension_numbers<[1], [0], [0], [1], [0, 0, 1, 1], [], []>} : vector<8x8xbf16>, vector<8x8xbf16>, vector<8x8xf32> -> vector<8x8xf32>
      "tpu.trace_stop"() : () -> ()
      %131 = arith.addf %127, %130 : vector<8x8xf32>
      %c2_70 = arith.constant 2 : index
      %c0_71 = arith.constant 0 : index
      %c0_72 = arith.constant 0 : index
      %132 = vector.load %arg11[%c2_70, %c0_71, %c0_72] : memref<4x8x8xf32, #tpu.memory_space<vmem>>, vector<1x8x8xf32>
      %133 = vector.shape_cast %132 : vector<1x8x8xf32> to vector<8x8xf32>
      %134 = vector.shape_cast %131 : vector<8x8xf32> to vector<1x8x8xf32>
      tpu.vector_store %arg11[%c2_70, %c0_71, %c0_72], %134 {strides = array<i32>} : memref<4x8x8xf32, #tpu.memory_space<vmem>>, vector<1x8x8xf32>,
      %c2_73 = arith.constant 2 : index
      %c0_74 = arith.constant 0 : index
      %c0_75 = arith.constant 0 : index
      %135 = vector.load %arg9[%c2_73, %c0_74, %c0_75] : memref<4x8x1xf32, #tpu.memory_space<vmem>>, vector<1x8x1xf32>
      %136 = vector.shape_cast %135 : vector<1x8x1xf32> to vector<8x1xf32>
      %137 = vector.shape_cast %109 : vector<8x1xf32> to vector<1x8x1xf32>
      tpu.vector_store %arg9[%c2_73, %c0_74, %c0_75], %137 {strides = array<i32>} : memref<4x8x1xf32, #tpu.memory_space<vmem>>, vector<1x8x1xf32>,
      %c0_76 = arith.constant 0 : index
      %c24 = arith.constant 24 : index
      %138 = vector.load %arg8[%c0_76, %c24] : memref<8x32xbf16, #tpu.memory_space<vmem>>, vector<8x8xbf16>
      %139 = vector.extract_strided_slice %13 {offsets = [0, 24], sizes = [8, 8], strides = [1, 1]} : vector<8x32xbf16> to vector<8x8xbf16>
      "tpu.trace_start"() <{level = 10 : i32, message = "qd,kd->qk"}> : () -> ()
      %cst_77 = arith.constant dense<0.000000e+00> : vector<8x8xf32>
      %140 = tpu.matmul %138, %139, %cst_77 {dimension_numbers = #tpu.dot_dimension_numbers<[1], [1], [0], [0], [0, 0, 1, 0], [], []>} : vector<8x8xbf16>, vector<8x8xbf16>, vector<8x8xf32> -> vector<8x8xf32>
      "tpu.trace_stop"() : () -> ()
      %141 = tpu.iota {dimensions = array<i32: 0>} : vector<8x8xi32>
      %142 = tpu.iota {dimensions = array<i32: 1>} : vector<8x8xi32>
      %143 = arith.cmpi sle, %142, %141 : vector<8x8xi32>
      %cst_78 = arith.constant 0xFF800000 : f32
      %144 = vector.broadcast %cst_78 : f32 to vector<8x8xf32>
      %145 = arith.select %143, %140, %144 : vector<8x8xi1>, vector<8x8xf32>
      %c3 = arith.constant 3 : index
      %c0_79 = arith.constant 0 : index
      %c0_80 = arith.constant 0 : index
      %146 = vector.load %arg9[%c3, %c0_79, %c0_80] : memref<4x8x1xf32, #tpu.memory_space<vmem>>, vector<1x8x1xf32>
      %147 = vector.shape_cast %146 : vector<1x8x1xf32> to vector<8x1xf32>
      %cst_81 = arith.constant dense<0xFF800000> : vector<8xf32>
      %148 = vector.multi_reduction <maximumf>, %145, %cst_81 [1] : vector<8x8xf32> to vector<8xf32>
      %149 = vector.shape_cast %148 : vector<8xf32> to vector<8x1xf32>
      %150 = arith.maximumf %147, %149 : vector<8x1xf32>
      %151 = arith.subf %147, %150 : vector<8x1xf32>
      %152 = math.exp %151 : vector<8x1xf32>
      %153 = vector.broadcast %150 : vector<8x1xf32> to vector<8x8xf32>
      %154 = arith.subf %145, %153 : vector<8x8xf32>
      %155 = math.exp %154 : vector<8x8xf32>
      %c3_82 = arith.constant 3 : index
      %c0_83 = arith.constant 0 : index
      %c0_84 = arith.constant 0 : index
      %156 = vector.load %arg10[%c3_82, %c0_83, %c0_84] : memref<4x8x1xf32, #tpu.memory_space<vmem>>, vector<1x8x1xf32>
      %157 = vector.shape_cast %156 : vector<1x8x1xf32> to vector<8x1xf32>
      %158 = arith.mulf %152, %157 : vector<8x1xf32>
      %cst_85 = arith.constant dense<0.000000e+00> : vector<8xf32>
      %159 = vector.multi_reduction <add>, %155, %cst_85 [1] : vector<8x8xf32> to vector<8xf32>
      %160 = vector.shape_cast %159 : vector<8xf32> to vector<8x1xf32>
      %161 = arith.addf %158, %160 : vector<8x1xf32>
      %c3_86 = arith.constant 3 : index
      %c0_87 = arith.constant 0 : index
      %c0_88 = arith.constant 0 : index
      %162 = vector.load %arg10[%c3_86, %c0_87, %c0_88] : memref<4x8x1xf32, #tpu.memory_space<vmem>>, vector<1x8x1xf32>
      %163 = vector.shape_cast %162 : vector<1x8x1xf32> to vector<8x1xf32>
      %164 = vector.shape_cast %161 : vector<8x1xf32> to vector<1x8x1xf32>
      tpu.vector_store %arg10[%c3_86, %c0_87, %c0_88], %164 {strides = array<i32>} : memref<4x8x1xf32, #tpu.memory_space<vmem>>, vector<1x8x1xf32>,
      %c3_89 = arith.constant 3 : index
      %c0_90 = arith.constant 0 : index
      %c0_91 = arith.constant 0 : index
      %165 = vector.load %arg11[%c3_89, %c0_90, %c0_91] : memref<4x8x8xf32, #tpu.memory_space<vmem>>, vector<1x8x8xf32>
      %166 = vector.shape_cast %165 : vector<1x8x8xf32> to vector<8x8xf32>
      %167 = vector.broadcast %152 : vector<8x1xf32> to vector<8x8xf32>
      %168 = arith.mulf %167, %166 : vector<8x8xf32>
      %169 = arith.truncf %155 : vector<8x8xf32> to vector<8x8xbf16>
      %170 = vector.extract_strided_slice %14 {offsets = [0, 24], sizes = [8, 8], strides = [1, 1]} : vector<8x32xbf16> to vector<8x8xbf16>
      "tpu.trace_start"() <{level = 10 : i32, message = "qk,kd->qd"}> : () -> ()
      %cst_92 = arith.constant dense<0.000000e+00> : vector<8x8xf32>
      %171 = tpu.matmul %169, %170, %cst_92 {dimension_numbers = #tpu.dot_dimension_numbers<[1], [0], [0], [1], [0, 0, 1, 1], [], []>} : vector<8x8xbf16>, vector<8x8xbf16>, vector<8x8xf32> -> vector<8x8xf32>
      "tpu.trace_stop"() : () -> ()
      %172 = arith.addf %168, %171 : vector<8x8xf32>
      %c3_93 = arith.constant 3 : index
      %c0_94 = arith.constant 0 : index
      %c0_95 = arith.constant 0 : index
      %173 = vector.load %arg11[%c3_93, %c0_94, %c0_95] : memref<4x8x8xf32, #tpu.memory_space<vmem>>, vector<1x8x8xf32>
      %174 = vector.shape_cast %173 : vector<1x8x8xf32> to vector<8x8xf32>
      %175 = vector.shape_cast %172 : vector<8x8xf32> to vector<1x8x8xf32>
      tpu.vector_store %arg11[%c3_93, %c0_94, %c0_95], %175 {strides = array<i32>} : memref<4x8x8xf32, #tpu.memory_space<vmem>>, vector<1x8x8xf32>,
      %c3_96 = arith.constant 3 : index
      %c0_97 = arith.constant 0 : index
      %c0_98 = arith.constant 0 : index
      %176 = vector.load %arg9[%c3_96, %c0_97, %c0_98] : memref<4x8x1xf32, #tpu.memory_space<vmem>>, vector<1x8x1xf32>
      %177 = vector.shape_cast %176 : vector<1x8x1xf32> to vector<8x1xf32>
      %178 = vector.shape_cast %150 : vector<8x1xf32> to vector<1x8x1xf32>
      tpu.vector_store %arg9[%c3_96, %c0_97, %c0_98], %178 {strides = array<i32>} : memref<4x8x1xf32, #tpu.memory_space<vmem>>, vector<1x8x1xf32>,
      %c0_99 = arith.constant 0 : index
      %c0_100 = arith.constant 0 : index
      %c0_101 = arith.constant 0 : index
      %179 = vector.load %arg10[%c0_99, %c0_100, %c0_101] : memref<4x8x1xf32, #tpu.memory_space<vmem>>, vector<1x8x1xf32>
      %180 = vector.shape_cast %179 : vector<1x8x1xf32> to vector<8x1xf32>
      %181 = tpu.reciprocal %180 {approx = true} : vector<8x1xf32> -> vector<8x1xf32>
      %c0_102 = arith.constant 0 : index
      %c0_103 = arith.constant 0 : index
      %c0_104 = arith.constant 0 : index
      %182 = vector.load %arg11[%c0_102, %c0_103, %c0_104] : memref<4x8x8xf32, #tpu.memory_space<vmem>>, vector<1x8x8xf32>
      %183 = vector.shape_cast %182 : vector<1x8x8xf32> to vector<8x8xf32>
      %184 = vector.broadcast %181 : vector<8x1xf32> to vector<8x8xf32>
      %185 = arith.mulf %183, %184 : vector<8x8xf32>
      %186 = arith.truncf %185 : vector<8x8xf32> to vector<8x8xbf16>
      %c0_105 = arith.constant 0 : index
      %c0_106 = arith.constant 0 : index
      %187 = vector.load %arg7[%c0_105, %c0_106] : memref<8x32xbf16, #tpu.memory_space<vmem>>, vector<8x8xbf16>
      tpu.vector_store %arg7[%c0_105, %c0_106], %186 {strides = array<i32>} : memref<8x32xbf16, #tpu.memory_space<vmem>>, vector<8x8xbf16>,
      %c1_107 = arith.constant 1 : index
      %c0_108 = arith.constant 0 : index
      %c0_109 = arith.constant 0 : index
      %188 = vector.load %arg10[%c1_107, %c0_108, %c0_109] : memref<4x8x1xf32, #tpu.memory_space<vmem>>, vector<1x8x1xf32>
      %189 = vector.shape_cast %188 : vector<1x8x1xf32> to vector<8x1xf32>
      %190 = tpu.reciprocal %189 {approx = true} : vector<8x1xf32> -> vector<8x1xf32>
      %c1_110 = arith.constant 1 : index
      %c0_111 = arith.constant 0 : index
      %c0_112 = arith.constant 0 : index
      %191 = vector.load %arg11[%c1_110, %c0_111, %c0_112] : memref<4x8x8xf32, #tpu.memory_space<vmem>>, vector<1x8x8xf32>
      %192 = vector.shape_cast %191 : vector<1x8x8xf32> to vector<8x8xf32>
      %193 = vector.broadcast %190 : vector<8x1xf32> to vector<8x8xf32>
      %194 = arith.mulf %192, %193 : vector<8x8xf32>
      %195 = arith.truncf %194 : vector<8x8xf32> to vector<8x8xbf16>
      %c0_113 = arith.constant 0 : index
      %c8_114 = arith.constant 8 : index
      %196 = vector.load %arg7[%c0_113, %c8_114] : memref<8x32xbf16, #tpu.memory_space<vmem>>, vector<8x8xbf16>
      tpu.vector_store %arg7[%c0_113, %c8_114], %195 {strides = array<i32>} : memref<8x32xbf16, #tpu.memory_space<vmem>>, vector<8x8xbf16>,
      %c2_115 = arith.constant 2 : index
      %c0_116 = arith.constant 0 : index
      %c0_117 = arith.constant 0 : index
      %197 = vector.load %arg10[%c2_115, %c0_116, %c0_117] : memref<4x8x1xf32, #tpu.memory_space<vmem>>, vector<1x8x1xf32>
      %198 = vector.shape_cast %197 : vector<1x8x1xf32> to vector<8x1xf32>
      %199 = tpu.reciprocal %198 {approx = true} : vector<8x1xf32> -> vector<8x1xf32>
      %c2_118 = arith.constant 2 : index
      %c0_119 = arith.constant 0 : index
      %c0_120 = arith.constant 0 : index
      %200 = vector.load %arg11[%c2_118, %c0_119, %c0_120] : memref<4x8x8xf32, #tpu.memory_space<vmem>>, vector<1x8x8xf32>
      %201 = vector.shape_cast %200 : vector<1x8x8xf32> to vector<8x8xf32>
      %202 = vector.broadcast %199 : vector<8x1xf32> to vector<8x8xf32>
      %203 = arith.mulf %201, %202 : vector<8x8xf32>
      %204 = arith.truncf %203 : vector<8x8xf32> to vector<8x8xbf16>
      %c0_121 = arith.constant 0 : index
      %c16_122 = arith.constant 16 : index
      %205 = vector.load %arg7[%c0_121, %c16_122] : memref<8x32xbf16, #tpu.memory_space<vmem>>, vector<8x8xbf16>
      tpu.vector_store %arg7[%c0_121, %c16_122], %204 {strides = array<i32>} : memref<8x32xbf16, #tpu.memory_space<vmem>>, vector<8x8xbf16>,
      %c3_123 = arith.constant 3 : index
      %c0_124 = arith.constant 0 : index
      %c0_125 = arith.constant 0 : index
      %206 = vector.load %arg10[%c3_123, %c0_124, %c0_125] : memref<4x8x1xf32, #tpu.memory_space<vmem>>, vector<1x8x1xf32>
      %207 = vector.shape_cast %206 : vector<1x8x1xf32> to vector<8x1xf32>
      %208 = tpu.reciprocal %207 {approx = true} : vector<8x1xf32> -> vector<8x1xf32>
      %c3_126 = arith.constant 3 : index
      %c0_127 = arith.constant 0 : index
      %c0_128 = arith.constant 0 : index
      %209 = vector.load %arg11[%c3_126, %c0_127, %c0_128] : memref<4x8x8xf32, #tpu.memory_space<vmem>>, vector<1x8x8xf32>
      %210 = vector.shape_cast %209 : vector<1x8x8xf32> to vector<8x8xf32>
      %211 = vector.broadcast %208 : vector<8x1xf32> to vector<8x8xf32>
      %212 = arith.mulf %210, %211 : vector<8x8xf32>
      %213 = arith.truncf %212 : vector<8x8xf32> to vector<8x8xbf16>
      %c0_129 = arith.constant 0 : index
      %c24_130 = arith.constant 24 : index
      %214 = vector.load %arg7[%c0_129, %c24_130] : memref<8x32xbf16, #tpu.memory_space<vmem>>, vector<8x8xbf16>
      tpu.vector_store %arg7[%c0_129, %c24_130], %213 {strides = array<i32>} : memref<8x32xbf16, #tpu.memory_space<vmem>>, vector<8x8xbf16>,
    } else {
    }
    return
  }
  func.func @transform_0(%arg0: i32, %arg1: i32, %arg2: memref<1xi32, #tpu.memory_space<smem>>, %arg3: memref<1xi32, #tpu.memory_space<smem>>) -> (i32, i32) {
    %c1_i32 = arith.constant 1 : i32
    %0 = arith.muli %arg0, %c1_i32 : i32
    %1 = arith.index_cast %arg1 : i32 to index
    %2 = memref.load %arg2[%1] : memref<1xi32, #tpu.memory_space<smem>>
    %3 = arith.addi %0, %2 : i32
    %c0_i32 = arith.constant 0 : i32
    %c0_i32_0 = arith.constant 0 : i32
    return %3, %c0_i32 : i32, i32
  }
  func.func @transform_1(%arg0: i32, %arg1: i32, %arg2: memref<1xi32, #tpu.memory_space<smem>>, %arg3: memref<1xi32, #tpu.memory_space<smem>>) -> (i32, i32) {
    %c1_i32 = arith.constant 1 : i32
    %0 = arith.muli %arg0, %c1_i32 : i32
    %1 = arith.index_cast %arg1 : i32 to index
    %2 = memref.load %arg3[%1] : memref<1xi32, #tpu.memory_space<smem>>
    %3 = arith.addi %0, %2 : i32
    %c0_i32 = arith.constant 0 : i32
    %c0_i32_0 = arith.constant 0 : i32
    return %3, %c0_i32 : i32, i32
  }
  func.func @transform_2(%arg0: i32, %arg1: i32, %arg2: memref<1xi32, #tpu.memory_space<smem>>, %arg3: memref<1xi32, #tpu.memory_space<smem>>) -> (i32, i32) {
    %c1_i32 = arith.constant 1 : i32
    %0 = arith.muli %arg0, %c1_i32 : i32
    %1 = arith.index_cast %arg1 : i32 to index
    %2 = memref.load %arg3[%1] : memref<1xi32, #tpu.memory_space<smem>>
    %3 = arith.addi %0, %2 : i32
    %c0_i32 = arith.constant 0 : i32
    %c0_i32_0 = arith.constant 0 : i32
    return %3, %c0_i32 : i32, i32
  }
  func.func @transform_3(%arg0: i32, %arg1: i32, %arg2: memref<1xi32, #tpu.memory_space<smem>>, %arg3: memref<1xi32, #tpu.memory_space<smem>>) -> (i32, i32) {
    %c1_i32 = arith.constant 1 : i32
    %0 = arith.muli %arg0, %c1_i32 : i32
    %1 = arith.index_cast %arg1 : i32 to index
    %2 = memref.load %arg2[%1] : memref<1xi32, #tpu.memory_space<smem>>
    %3 = arith.addi %0, %2 : i32
    %c0_i32 = arith.constant 0 : i32
    %c0_i32_0 = arith.constant 0 : i32
    return %3, %c0_i32 : i32, i32
  }
}

module attributes {stable_mosaic.version = 11 : i64} {
  func.func @_linear_kernel(%arg0: i32, %arg1: memref<16x32xbf16, #tpu.memory_space<vmem>>, %arg2: memref<32x32xbf16, #tpu.memory_space<vmem>>, %arg3: memref<1x32xf32, #tpu.memory_space<vmem>>, %arg4: memref<16x32xbf16, #tpu.memory_space<vmem>>) attributes {dimension_semantics = [#tpu.dimension_semantics<parallel>], iteration_bounds = array<i64: 1>, scalar_prefetch = 0 : i64, scratch_operands = 0 : i64, tpu.core_type = #tpu.core_type<tc>, window_params = [{transform_indices = @transform_0, window_bounds = array<i64: 16, 32>}, {pipeline_mode = #tpu.pipeline_mode<synchronous>, transform_indices = @transform_1, window_bounds = array<i64: 32, 32>}, {pipeline_mode = #tpu.pipeline_mode<synchronous>, transform_indices = @transform_2, window_bounds = array<i64: 1, 32>}, {transform_indices = @transform_3, window_bounds = array<i64: 16, 32>}]} {
    %c0 = arith.constant 0 : index
    %c0_0 = arith.constant 0 : index
    %0 = vector.load %arg1[%c0, %c0_0] : memref<16x32xbf16, #tpu.memory_space<vmem>>, vector<16x32xbf16>
    %c0_1 = arith.constant 0 : index
    %c0_2 = arith.constant 0 : index
    %1 = vector.load %arg2[%c0_1, %c0_2] : memref<32x32xbf16, #tpu.memory_space<vmem>>, vector<32x32xbf16>
    %cst = arith.constant dense<0.000000e+00> : vector<16x32xf32>
    %2 = tpu.matmul %0, %1, %cst {dimension_numbers = #tpu.dot_dimension_numbers<[1], [0], [0], [1], [0, 0, 1, 1], [], []>} : vector<16x32xbf16>, vector<32x32xbf16>, vector<16x32xf32> -> vector<16x32xf32>
    %c0_3 = arith.constant 0 : index
    %c0_4 = arith.constant 0 : index
    %3 = vector.load %arg3[%c0_3, %c0_4] : memref<1x32xf32, #tpu.memory_space<vmem>>, vector<1x32xf32>
    %4 = vector.broadcast %3 : vector<1x32xf32> to vector<16x32xf32>
    %5 = arith.addf %2, %4 : vector<16x32xf32>
    %6 = arith.truncf %5 : vector<16x32xf32> to vector<16x32xbf16>
    %c0_5 = arith.constant 0 : index
    %c0_6 = arith.constant 0 : index
    %7 = vector.load %arg4[%c0_5, %c0_6] : memref<16x32xbf16, #tpu.memory_space<vmem>>, vector<16x32xbf16>
    tpu.vector_store %arg4[%c0_5, %c0_6], %6 {strides = array<i32>} : memref<16x32xbf16, #tpu.memory_space<vmem>>, vector<16x32xbf16>,
    return
  }
  func.func @transform_0(%arg0: i32) -> (i32, i32) {
    %c0_i32 = arith.constant 0 : i32
    %c0_i32_0 = arith.constant 0 : i32
    return %arg0, %c0_i32 : i32, i32
  }
  func.func @transform_1(%arg0: i32) -> (i32, i32) {
    %c0_i32 = arith.constant 0 : i32
    %c0_i32_0 = arith.constant 0 : i32
    %c0_i32_1 = arith.constant 0 : i32
    return %c0_i32, %c0_i32_0 : i32, i32
  }
  func.func @transform_2(%arg0: i32) -> (i32, i32) {
    %c0_i32 = arith.constant 0 : i32
    %c0_i32_0 = arith.constant 0 : i32
    %c0_i32_1 = arith.constant 0 : i32
    return %c0_i32, %c0_i32_0 : i32, i32
  }
  func.func @transform_3(%arg0: i32) -> (i32, i32) {
    %c0_i32 = arith.constant 0 : i32
    %c0_i32_0 = arith.constant 0 : i32
    return %arg0, %c0_i32 : i32, i32
  }
}

</mosaic_0001>

<llo_original>
// kernel: gpt2_attention_forward.3
$region0: #{gpt2_attention_forward.3}
  #allocation0 [shape = 'u32[]', space=smem, size = 0x4, offset = 0x4, fixed_abs, tag = 'smem constant byte address 0x4 - core index']
  #allocation1 [shape = 'u32[72,128]{1,0:T(1,128)}', space=vmem, size = 0x9000, scoped, tag = 'internal scratch']
  %s0 = inlined_call_operand.vmem [shape: bf16[16,32], index: 0, kind: input, shape index: {}]
  %s1 = inlined_call_operand.vmem [shape: bf16[32,32], index: 1, kind: input, shape index: {}]
  %s2 = inlined_call_operand.vmem [shape: bf16[32,32], index: 2, kind: input, shape index: {}]
  %s3 = inlined_call_operand.vmem [shape: bf16[32,32], index: 3, kind: input, shape index: {}]
  %s4 = inlined_call_operand.vmem [shape: f32[1,32], index: 4, kind: input, shape index: {}]
  %s5 = inlined_call_operand.vmem [shape: f32[1,32], index: 5, kind: input, shape index: {}]
  %s6 = inlined_call_operand.vmem [shape: f32[1,32], index: 6, kind: input, shape index: {}]
  %s7 = inlined_call_operand.vmem [shape: bf16[16,32], index: 7, kind: output, shape index: {0}]
  %s8 = inlined_call_operand.vmem [shape: bf16[16,32], index: 8, kind: output, shape index: {1}]
  %s9 = inlined_call_operand.vmem [shape: bf16[16,32], index: 9, kind: output, shape index: {2}]
  %10 = xla_tuple %s7, %s8, %s9
  %s11 = sld [smem:[#allocation0]]
  $region54: #{gpt2_attention_forward.3} parent=0
    _
  %s13 = ssub.s32 1, %s11
  %s14 = scalar_select 0, %s13, %s11
  // Predicated region
  $region2: #{gpt2_attention_forward.3} parent=0 // pred_check
    _
  $region3: #{gpt2_attention_forward.3} parent=0 // pred_check_branch
    %16 = sbr.rel (0) target = $region5
  $region4: #{gpt2_attention_forward.3} parent=0 // pred_region
    _
  $region5: #{gpt2_attention_forward.3} parent=0 // pred_fallthru
    _
  // Predicated region
  $region6: #{gpt2_attention_forward.3} parent=0 // pred_check
    _
  $region7: #{gpt2_attention_forward.3} parent=0 // pred_check_branch
    %18 = sbr.rel (0) target = $region9
  $region8: #{gpt2_attention_forward.3} parent=0 // pred_region
    _
  $region9: #{gpt2_attention_forward.3} parent=0 // pred_fallthru
    _
  // Predicated region
  $region10: #{gpt2_attention_forward.3} parent=0 // pred_check
    _
  $region11: #{gpt2_attention_forward.3} parent=0 // pred_check_branch
    %20 = sbr.rel (0) target = $region13
  $region12: #{gpt2_attention_forward.3} parent=0 // pred_region
    _
  $region13: #{gpt2_attention_forward.3} parent=0 // pred_fallthru
    _
  // Predicated region
  $region14: #{gpt2_attention_forward.3} parent=0 // pred_check
    _
  $region15: #{gpt2_attention_forward.3} parent=0 // pred_check_branch
    %22 = sbr.rel (0) target = $region17
  $region16: #{gpt2_attention_forward.3} parent=0 // pred_region
    _
  $region17: #{gpt2_attention_forward.3} parent=0 // pred_fallthru
    _
  // Predicated region
  $region18: #{gpt2_attention_forward.3} parent=0 // pred_check
    _
  $region19: #{gpt2_attention_forward.3} parent=0 // pred_check_branch
    %24 = sbr.rel (0) target = $region21
  $region20: #{gpt2_attention_forward.3} parent=0 // pred_region
    _
  $region21: #{gpt2_attention_forward.3} parent=0 // pred_fallthru
    _
  // Predicated region
  $region22: #{gpt2_attention_forward.3} parent=0 // pred_check
    _
  $region23: #{gpt2_attention_forward.3} parent=0 // pred_check_branch
    %26 = sbr.rel (0) target = $region25
  $region24: #{gpt2_attention_forward.3} parent=0 // pred_region
    _
  $region25: #{gpt2_attention_forward.3} parent=0 // pred_fallthru
    _
  // Predicated region
  $region26: #{gpt2_attention_forward.3} parent=0 // pred_check
    _
  $region27: #{gpt2_attention_forward.3} parent=0 // pred_check_branch
    %28 = sbr.rel (0) target = $region29
  $region28: #{gpt2_attention_forward.3} parent=0 // pred_region
    _
  $region29: #{gpt2_attention_forward.3} parent=0 // pred_fallthru
    _
  %v30 = vld [vmem:[%s0] sm:$0xf]
  %v31 = vld [vmem:[%s0 + $0x4] sm:$0xf]
  %v32 = vld [vmem:[%s1] sm:$0xf]
  %v33 = vld [vmem:[%s1 + $0x4] sm:$0xf]
  %v34 = vld [vmem:[%s1 + $0x8] sm:$0xf]
  %v35 = vld [vmem:[%s1 + $0xc] sm:$0xf]
  %v36 = vld [vmem:[%s4] sm:$0x1]
  %v38 = vperm.slane %v36, 0
  %v42 = vunpack.c.l.b16 %v30
  %v43 = vunpack.c.l.b16 %v31
  %v44 = vpack.c.b16 %v43, %v42
  %v49 = vunpack.c.l.b16 %v32
  %v50 = vunpack.c.l.b16 %v33
  %v51 = vunpack.c.l.b16 %v34
  %v52 = vunpack.c.l.b16 %v35
  %v53 = vpack.c.b16 %v50, %v49
  %v54 = vpack.c.b16 %v52, %v51
  %vm57 = vcmask 261120
  %v59 = vsel %vm57, %v44, 0
  %61 = vmatpush.bf16.msra.mxu0 0
  %62 = vmatpush.bf16.msra.mxu0 0
  %63 = vmatpush.bf16.msra.mxu0 0
  %64 = vmatpush.bf16.msra.mxu0 0
  %65 = vmatpush.bf16.msra.mxu0 0
  %66 = vmatpush.bf16.msra.mxu0 0
  %67 = vmatpush.bf16.msra.mxu0 %v54
  %68 = vmatpush.bf16.msra.mxu0 %v53
  %69 = vmatmul.bf16.gmra.mxu0 %v59
  %v70 = vpop.f32.mrf.mxu0
  %v71 = vadd.f32 %v38, %v70
  %v72 = vpop.f32.mrf.mxu0
  %v73 = vadd.f32 %v38, %v72
  %74 = vdwg.mxu0
  %v75 = vpack.c.bf16 %v71, %v71
  %v76 = vpack.c.bf16 %v73, %v73
  %vm77 = vcmask 257024
  %78 = vst.msk [vmem:[%s7] sm:$0xf] %vm77, %v75
  %79 = vst.msk [vmem:[%s7 + $0x4] sm:$0xf] %vm77, %v76
  %v80 = vld [vmem:[%s2] sm:$0xf]
  %v81 = vld [vmem:[%s2 + $0x4] sm:$0xf]
  %v82 = vld [vmem:[%s2 + $0x8] sm:$0xf]
  %v83 = vld [vmem:[%s2 + $0xc] sm:$0xf]
  %v84 = vld [vmem:[%s5] sm:$0x1]
  %v86 = vperm.slane %v84, 0
  %v92 = vunpack.c.l.b16 %v80
  %v93 = vunpack.c.l.b16 %v81
  %v94 = vunpack.c.l.b16 %v82
  %v95 = vunpack.c.l.b16 %v83
  %v96 = vpack.c.b16 %v93, %v92
  %v97 = vpack.c.b16 %v95, %v94
  %100 = vmatpush.bf16.msra.mxu0 0
  %101 = vmatpush.bf16.msra.mxu0 0
  %102 = vmatpush.bf16.msra.mxu0 0
  %103 = vmatpush.bf16.msra.mxu0 0
  %104 = vmatpush.bf16.msra.mxu0 0
  %105 = vmatpush.bf16.msra.mxu0 0
  %106 = vmatpush.bf16.msra.mxu0 %v97
  %107 = vmatpush.bf16.msra.mxu0 %v96
  %108 = vmatmul.bf16.gmra.mxu0 %v59
  %v109 = vpop.f32.mrf.mxu0
  %v110 = vadd.f32 %v86, %v109
  %v111 = vpop.f32.mrf.mxu0
  %v112 = vadd.f32 %v86, %v111
  %113 = vdwg.mxu0
  %v114 = vpack.c.bf16 %v110, %v110
  %v115 = vpack.c.bf16 %v112, %v112
  %116 = vst.msk [vmem:[%s8] sm:$0xf] %vm77, %v114
  %117 = vst.msk [vmem:[%s8 + $0x4] sm:$0xf] %vm77, %v115
  %v118 = vld [vmem:[%s3] sm:$0xf]
  %v119 = vld [vmem:[%s3 + $0x4] sm:$0xf]
  %v120 = vld [vmem:[%s3 + $0x8] sm:$0xf]
  %v121 = vld [vmem:[%s3 + $0xc] sm:$0xf]
  %v122 = vld [vmem:[%s6] sm:$0x1]
  %v124 = vperm.slane %v122, 0
  %v130 = vunpack.c.l.b16 %v118
  %v131 = vunpack.c.l.b16 %v119
  %v132 = vunpack.c.l.b16 %v120
  %v133 = vunpack.c.l.b16 %v121
  %v134 = vpack.c.b16 %v131, %v130
  %v135 = vpack.c.b16 %v133, %v132
  %138 = vmatpush.bf16.msra.mxu0 0
  %139 = vmatpush.bf16.msra.mxu0 0
  %140 = vmatpush.bf16.msra.mxu0 0
  %141 = vmatpush.bf16.msra.mxu0 0
  %142 = vmatpush.bf16.msra.mxu0 0
  %143 = vmatpush.bf16.msra.mxu0 0
  %144 = vmatpush.bf16.msra.mxu0 %v135
  %145 = vmatpush.bf16.msra.mxu0 %v134
  %146 = vmatmul.bf16.gmra.mxu0 %v59
  %v147 = vpop.f32.mrf.mxu0
  %v148 = vadd.f32 %v124, %v147
  %v149 = vpop.f32.mrf.mxu0
  %v150 = vadd.f32 %v124, %v149
  %151 = vdwg.mxu0
  %v152 = vpack.c.bf16 %v148, %v148
  %v153 = vpack.c.bf16 %v150, %v150
  %154 = vst.msk [vmem:[%s9] sm:$0xf] %vm77, %v152
  %155 = vst.msk [vmem:[%s9 + $0x4] sm:$0xf] %vm77, %v153
  // Predicated region
  $region30: #{gpt2_attention_forward.3} parent=0 // pred_check
    _
  $region31: #{gpt2_attention_forward.3} parent=0 // pred_check_branch
    %157 = sbr.rel (0) target = $region33
  $region32: #{gpt2_attention_forward.3} parent=0 // pred_region
    _
  $region33: #{gpt2_attention_forward.3} parent=0 // pred_fallthru
    _
  // Predicated region
  $region34: #{gpt2_attention_forward.3} parent=0 // pred_check
    _
  $region35: #{gpt2_attention_forward.3} parent=0 // pred_check_branch
    %159 = sbr.rel (0) target = $region37
  $region36: #{gpt2_attention_forward.3} parent=0 // pred_region
    _
  $region37: #{gpt2_attention_forward.3} parent=0 // pred_fallthru
    _
  // Predicated region
  $region38: #{gpt2_attention_forward.3} parent=0 // pred_check
    _
  $region39: #{gpt2_attention_forward.3} parent=0 // pred_check_branch
    %161 = sbr.rel (0) target = $region41
  $region40: #{gpt2_attention_forward.3} parent=0 // pred_region
    _
  $region41: #{gpt2_attention_forward.3} parent=0 // pred_fallthru
    _
  // Predicated region
  $region42: #{gpt2_attention_forward.3} parent=0 // pred_check
    _
  $region43: #{gpt2_attention_forward.3} parent=0 // pred_check_branch
    %163 = sbr.rel (0) target = $region45
  $region44: #{gpt2_attention_forward.3} parent=0 // pred_region
    _
  $region45: #{gpt2_attention_forward.3} parent=0 // pred_fallthru
    _
  // Predicated region
  $region46: #{gpt2_attention_forward.3} parent=0 // pred_check
    _
  $region47: #{gpt2_attention_forward.3} parent=0 // pred_check_branch
    %165 = sbr.rel (0) target = $region49
  $region48: #{gpt2_attention_forward.3} parent=0 // pred_region
    _
  $region49: #{gpt2_attention_forward.3} parent=0 // pred_fallthru
    _
  // Predicated region
  $region50: #{gpt2_attention_forward.3} parent=0 // pred_check
    _
  $region51: #{gpt2_attention_forward.3} parent=0 // pred_check_branch
    %167 = sbr.rel (0) target = $region53
  $region52: #{gpt2_attention_forward.3} parent=0 // pred_region
    _
  $region53: #{gpt2_attention_forward.3} parent=0 // pred_fallthru
    _

// kernel: gpt2_attention_forward.5
$region0: #{gpt2_attention_forward.5}
  #allocation0 [shape = 'u32[]', space=smem, size = 0x4, offset = 0x4, fixed_abs, tag = 'smem constant byte address 0x4 - core index']
  #allocation1 [shape = 'u32[72,128]{1,0:T(1,128)}', space=vmem, size = 0x9000, scoped, tag = 'internal scratch']
  %s0 = inlined_call_operand.vmem [shape: bf16[16,32], index: 0, kind: input, shape index: {}]
  %s1 = inlined_call_operand.vmem [shape: bf16[32,32], index: 1, kind: input, shape index: {}]
  %s2 = inlined_call_operand.vmem [shape: f32[1,32], index: 2, kind: input, shape index: {}]
  %s3 = inlined_call_operand.hbm [shape: bf16[16,32], index: 3, kind: output, shape index: {}]
  %s4 = sld [smem:[#allocation0]]
  $region22: #{gpt2_attention_forward.5} parent=0
    _
  %s6 = ssub.s32 1, %s4
  %s7 = scalar_select 0, %s6, %s4
  $region1: #{gpt2_attention_forward.5} parent=0
    #allocation2 [shape = 'u8[4096]{0}', space=vmem, size = 0x1000, scoped, tag = 'output window, operand 0, single buffered']
    #allocation3 [shape = 's32[1]{0}', space=sflag, size = 0x4, scoped, tag = 'scoped memory for gpt2_attention_forward.5']
    %8 = vsyncpa [#allocation3], 0
    // Predicated region
    $region2: #{gpt2_attention_forward.5} parent=1 // pred_check
      _
    $region3: #{gpt2_attention_forward.5} parent=1 // pred_check_branch
      %10 = sbr.rel (0) target = $region5
    $region4: #{gpt2_attention_forward.5} parent=1 // pred_region
      _
    $region5: #{gpt2_attention_forward.5} parent=1 // pred_fallthru
      _
    // Predicated region
    $region6: #{gpt2_attention_forward.5} parent=1 // pred_check
      _
    $region7: #{gpt2_attention_forward.5} parent=1 // pred_check_branch
      %12 = sbr.rel (0) target = $region9
    $region8: #{gpt2_attention_forward.5} parent=1 // pred_region
      _
    $region9: #{gpt2_attention_forward.5} parent=1 // pred_fallthru
      _
    // Predicated region
    $region10: #{gpt2_attention_forward.5} parent=1 // pred_check
      _
    $region11: #{gpt2_attention_forward.5} parent=1 // pred_check_branch
      %14 = sbr.rel (0) target = $region13
    $region12: #{gpt2_attention_forward.5} parent=1 // pred_region
      _
    $region13: #{gpt2_attention_forward.5} parent=1 // pred_fallthru
      _
    %v16 = vld [vmem:[%s0] sm:$0xf]
    %v17 = vld [vmem:[%s0 + $0x4] sm:$0xf]
    %v18 = vld [vmem:[%s1] sm:$0xf]
    %v19 = vld [vmem:[%s1 + $0x4] sm:$0xf]
    %v20 = vld [vmem:[%s1 + $0x8] sm:$0xf]
    %v21 = vld [vmem:[%s1 + $0xc] sm:$0xf]
    %v22 = vld [vmem:[%s2] sm:$0x1]
    %v24 = vperm.slane %v22, 0
    %v28 = vunpack.c.l.b16 %v16
    %v29 = vunpack.c.l.b16 %v17
    %v30 = vpack.c.b16 %v29, %v28
    %v35 = vunpack.c.l.b16 %v18
    %v36 = vunpack.c.l.b16 %v19
    %v37 = vunpack.c.l.b16 %v20
    %v38 = vunpack.c.l.b16 %v21
    %v39 = vpack.c.b16 %v36, %v35
    %v40 = vpack.c.b16 %v38, %v37
    %vm43 = vcmask 261120
    %v45 = vsel %vm43, %v30, 0
    %47 = vmatpush.bf16.msra.mxu0 0
    %48 = vmatpush.bf16.msra.mxu0 0
    %49 = vmatpush.bf16.msra.mxu0 0
    %50 = vmatpush.bf16.msra.mxu0 0
    %51 = vmatpush.bf16.msra.mxu0 0
    %52 = vmatpush.bf16.msra.mxu0 0
    %53 = vmatpush.bf16.msra.mxu0 %v40
    %54 = vmatpush.bf16.msra.mxu0 %v39
    %55 = vmatmul.bf16.gmra.mxu0 %v45
    %v56 = vpop.f32.mrf.mxu0
    %v57 = vadd.f32 %v24, %v56
    %v58 = vpop.f32.mrf.mxu0
    %v59 = vadd.f32 %v24, %v58
    %60 = vdwg.mxu0
    %v61 = vpack.c.bf16 %v57, %v57
    %v62 = vpack.c.bf16 %v59, %v59
    %vm63 = vcmask 257024
    %64 = vst.msk [vmem:[#allocation2] sm:$0xf] %vm63, %v61
    %65 = vst.msk [vmem:[#allocation2 + $0x4] sm:$0xf] %vm63, %v62
    // Predicated region
    $region14: #{gpt2_attention_forward.5} parent=1 // pred_check
      _
    $region15: #{gpt2_attention_forward.5} parent=1 // pred_check_branch
      %67 = sbr.rel (0) target = $region17
    $region16: #{gpt2_attention_forward.5} parent=1 // pred_region
      %69 = vsyncadd [#allocation3], 0
      %s70 = sshll.u32 [#allocation2], 4
      %s71 = int_to_ptr.vmem [resolvable:$true] %s70
      %s72 = sshll.u32 %s3, 4
      %s73 = int_to_ptr.hbm [resolvable:$true] %s72
      %78 = dma.vmem_to_hbm [thread:$0]  %s71, 128, %s73, [#allocation3], 64, 64, 4
    $region17: #{gpt2_attention_forward.5} parent=1 // pred_fallthru
      _
    // Predicated region
    $region18: #{gpt2_attention_forward.5} parent=1 // pred_check
      _
    $region19: #{gpt2_attention_forward.5} parent=1 // pred_check_branch
      %80 = sbr.rel (0) target = $region21
    $region20: #{gpt2_attention_forward.5} parent=1 // pred_region
      %82 = dma.done [#allocation3], 128
    $region21: #{gpt2_attention_forward.5} parent=1 // pred_fallthru
      _
    %83 = vsyncpa [#allocation3], 1

// kernel: gpt2_attention_forward.4
$region0: #{gpt2_attention_forward.4}
  #allocation0 [shape = 'u32[]', space=smem, size = 0x4, offset = 0x4, fixed_abs, tag = 'smem constant byte address 0x4 - core index']
  #allocation1 [shape = 'u32[72,128]{1,0:T(1,128)}', space=vmem, size = 0x9000, scoped, tag = 'internal scratch']
  #allocation2 [shape = 'bf16[8,32]{1,0:T(8,128)(2,1)}', space=vmem, size = 0x800, scoped, tag = 'scratch operand']
  #allocation3 [shape = 'f32[4,8,1]{2,1,0:T(8,128)}', space=vmem, size = 0x4000, scoped, tag = 'scratch operand']
  #allocation4 [shape = 'f32[4,8,1]{2,1,0:T(8,128)}', space=vmem, size = 0x4000, scoped, tag = 'scratch operand']
  #allocation5 [shape = 'f32[4,8,8]{2,1,0:T(8,128)}', space=vmem, size = 0x4000, scoped, tag = 'scratch operand']
  #allocation6 [shape = 's32[1]{0}', space=sflag, size = 0x4, scoped, tag = 'scoped memory for gpt2_attention_forward.4']
  #allocation7 [shape = 's32[1]{0:T(128)S(6)}', space=smem, size = 0x200, scoped, tag = 'prefetched SMEM operand 0']
  #allocation8 [shape = 's32[1]{0:T(128)S(6)}', space=smem, size = 0x200, scoped, tag = 'prefetched SMEM operand 1']
  %s0 = inlined_call_operand.<no memory space> [shape: s32[1], index: 0, kind: input, shape index: {}, may-alias: {0,1}]
  %s1 = inlined_call_operand.<no memory space> [shape: s32[1], index: 1, kind: input, shape index: {}, may-alias: {0,1}]
  %s2 = inlined_call_operand.vmem [shape: bf16[16,32], index: 2, kind: input, shape index: {}]
  %s3 = inlined_call_operand.vmem [shape: bf16[16,32], index: 3, kind: input, shape index: {}]
  %s4 = inlined_call_operand.vmem [shape: bf16[16,32], index: 4, kind: input, shape index: {}]
  %s5 = inlined_call_operand.vmem [shape: bf16[16,32], index: 5, kind: output, shape index: {}]
  %s6 = sld [smem:[#allocation0]]
  $region57: #{gpt2_attention_forward.4} parent=0
    _
  %s8 = ssub.s32 1, %s6
  %s9 = scalar_select 0, %s8, %s6
  %10 = sst [smem:[#allocation7]] %s0
  %11 = sst [smem:[#allocation8]] %s1
  loop: start=0, step=1, limit=4
  $region2: #{gpt2_attention_forward.4} parent=0 // loop_pre_header
    _
  $region3: #{gpt2_attention_forward.4} parent=0 // loop_header
    %s13 = sphi 0, %s17
    %p14 = scmp.ge.s32.totalorder %s13, 4
    %s20 = sphi 0, %s32
    %s21 = sphi 0, %s28
    %s22 = sphi 0, %s20
    %s23 = sphi 0, %s21
    %s24 = sphi 0, %s22
    %s25 = sphi 0, %s23
    %s39 = sphi 0, %s41
    %s42 = sphi 0, %s39
    %s43 = sphi 0, %s42
    %s59 = sphi 0, %s43
    %s69 = sphi 0, %s71
    %s72 = sphi 0, %s69
    %s73 = sphi 0, %s72
    %s89 = sphi 0, %s73
    %s99 = sphi 0, %s101
    %s102 = sphi 0, %s99
    %s103 = sphi 0, %s102
    %s119 = sphi 0, %s103
    %s129 = sphi 0, %s131
    %s132 = sphi 0, %s129
    %s133 = sphi 0, %s132
    %s149 = sphi 0, %s133
  $region4: #{gpt2_attention_forward.4} parent=0 // loop_header_branch
    %16 = sbr.rel (%p14) target = $region8
  $region5: #{gpt2_attention_forward.4} parent=0 // loop_body
    %s18 = ssub.s32 %s13, 1
    %s19 = ssub.s32 %s13, 2
    %s26 = sadd.s32 1, %s21
    %p27 = scmp.ge.s32.totalorder %s26, 1
    %s28 = scalar_select %p27, 0, %s26
    %s29 = sadd.s32 1, %s20
    %s30 = scalar_select %p27, %s29, %s20
    %p31 = scmp.ge.s32.totalorder %s30, 2
    %s32 = scalar_select %p31, 0, %s30
    %s33 = sld [smem:[#allocation7 + %s21]]
    %s34 = sadd.s32 %s20, %s33
    %s35 = sld [smem:[#allocation7 + %s28]]
    %s36 = sadd.s32 %s32, %s35
    %s37 = ssub.s32 %s34, %s36
    %p38 = scmp.eq.s32.totalorder %s37, 0
    %s40 = sadd.s32 %s39, 1
    %s41 = scalar_select %p38, %s39, %s40
    %p44 = pneg %p38
    %p45 = scmp.eq.s32.totalorder %s13, 1
    %p46 = por %p44, %p45
    %p47 = scmp.ne.s32.totalorder %s39, %s42
    %p48 = scmp.eq.s32.totalorder %s13, 0
    %p49 = por %p47, %p48
    %p50 = scmp.ne.s32.totalorder %s39, %s42
    %p51 = scmp.eq.s32.totalorder %s18, 1
    %p52 = por %p50, %p51
    %p53 = scmp.ne.s32.totalorder %s42, %s43
    %p54 = scmp.eq.s32.totalorder %s18, 0
    %p55 = por %p53, %p54
    %p56 = scmp.ne.s32.totalorder %s42, %s43
    %p57 = scmp.eq.s32.totalorder %s19, 1
    %p58 = por %p56, %p57
    %p60 = scmp.ne.s32.totalorder %s43, %s59
    %p61 = scmp.eq.s32.totalorder %s19, 0
    %p62 = por %p60, %p61
    %s63 = sld [smem:[#allocation8 + %s21]]
    %s64 = sadd.s32 %s20, %s63
    %s65 = sld [smem:[#allocation8 + %s28]]
    %s66 = sadd.s32 %s32, %s65
    %s67 = ssub.s32 %s64, %s66
    %p68 = scmp.eq.s32.totalorder %s67, 0
    %s70 = sadd.s32 %s69, 1
    %s71 = scalar_select %p68, %s69, %s70
    %p74 = pneg %p68
    %p75 = scmp.eq.s32.totalorder %s13, 1
    %p76 = por %p74, %p75
    %p77 = scmp.ne.s32.totalorder %s69, %s72
    %p78 = scmp.eq.s32.totalorder %s13, 0
    %p79 = por %p77, %p78
    %p80 = scmp.ne.s32.totalorder %s69, %s72
    %p81 = scmp.eq.s32.totalorder %s18, 1
    %p82 = por %p80, %p81
    %p83 = scmp.ne.s32.totalorder %s72, %s73
    %p84 = scmp.eq.s32.totalorder %s18, 0
    %p85 = por %p83, %p84
    %p86 = scmp.ne.s32.totalorder %s72, %s73
    %p87 = scmp.eq.s32.totalorder %s19, 1
    %p88 = por %p86, %p87
    %p90 = scmp.ne.s32.totalorder %s73, %s89
    %p91 = scmp.eq.s32.totalorder %s19, 0
    %p92 = por %p90, %p91
    %s93 = sld [smem:[#allocation8 + %s21]]
    %s94 = sadd.s32 %s20, %s93
    %s95 = sld [smem:[#allocation8 + %s28]]
    %s96 = sadd.s32 %s32, %s95
    %s97 = ssub.s32 %s94, %s96
    %p98 = scmp.eq.s32.totalorder %s97, 0
    %s100 = sadd.s32 %s99, 1
    %s101 = scalar_select %p98, %s99, %s100
    %p104 = pneg %p98
    %p105 = scmp.eq.s32.totalorder %s13, 1
    %p106 = por %p104, %p105
    %p107 = scmp.ne.s32.totalorder %s99, %s102
    %p108 = scmp.eq.s32.totalorder %s13, 0
    %p109 = por %p107, %p108
    %p110 = scmp.ne.s32.totalorder %s99, %s102
    %p111 = scmp.eq.s32.totalorder %s18, 1
    %p112 = por %p110, %p111
    %p113 = scmp.ne.s32.totalorder %s102, %s103
    %p114 = scmp.eq.s32.totalorder %s18, 0
    %p115 = por %p113, %p114
    %p116 = scmp.ne.s32.totalorder %s102, %s103
    %p117 = scmp.eq.s32.totalorder %s19, 1
    %p118 = por %p116, %p117
    %p120 = scmp.ne.s32.totalorder %s103, %s119
    %p121 = scmp.eq.s32.totalorder %s19, 0
    %p122 = por %p120, %p121
    %s123 = sld [smem:[#allocation7 + %s21]]
    %s124 = sadd.s32 %s20, %s123
    %s125 = sld [smem:[#allocation7 + %s28]]
    %s126 = sadd.s32 %s32, %s125
    %s127 = ssub.s32 %s124, %s126
    %p128 = scmp.eq.s32.totalorder %s127, 0
    %s130 = sadd.s32 %s129, 1
    %s131 = scalar_select %p128, %s129, %s130
    %p134 = pneg %p128
    %p135 = scmp.eq.s32.totalorder %s13, 1
    %p136 = por %p134, %p135
    %p137 = scmp.ne.s32.totalorder %s129, %s132
    %p138 = scmp.eq.s32.totalorder %s13, 0
    %p139 = por %p137, %p138
    %p140 = scmp.ne.s32.totalorder %s129, %s132
    %p141 = scmp.eq.s32.totalorder %s18, 1
    %p142 = por %p140, %p141
    %p143 = scmp.ne.s32.totalorder %s132, %s133
    %p144 = scmp.eq.s32.totalorder %s18, 0
    %p145 = por %p143, %p144
    %p146 = scmp.ne.s32.totalorder %s132, %s133
    %p147 = scmp.eq.s32.totalorder %s19, 1
    %p148 = por %p146, %p147
    %p150 = scmp.ne.s32.totalorder %s133, %s149
    %p151 = scmp.eq.s32.totalorder %s19, 0
    %p152 = por %p150, %p151
    %p153 = scmp.le.s32.totalorder 1, %s13
    %p154 = scmp.lt.s32.totalorder %s13, 3
    %p155 = pnand %p153, %p154
    %p156 = pneg %p155
    // Predicated region
    $region9: #{gpt2_attention_forward.4} parent=5 // pred_check
      _
    $region10: #{gpt2_attention_forward.4} parent=5 // pred_check_branch
      %158 = sbr.rel (%p155) target = $region12
    $region11: #{gpt2_attention_forward.4} parent=5 // pred_region
      %s159 = ssub.s32 %s13, 1
    $region12: #{gpt2_attention_forward.4} parent=5 // pred_fallthru
      _
    %p160 = scmp.lt.s32.totalorder %s13, 2
    // Predicated region
    $region13: #{gpt2_attention_forward.4} parent=5 // pred_check
      %p161 = pneg %p160
    $region14: #{gpt2_attention_forward.4} parent=5 // pred_check_branch
      %163 = sbr.rel (%p161) target = $region16
    $region15: #{gpt2_attention_forward.4} parent=5 // pred_region
      // Predicated region
      $region17: #{gpt2_attention_forward.4} parent=15 // pred_check
        %p164 = pneg %p49
      $region18: #{gpt2_attention_forward.4} parent=15 // pred_check_branch
        %166 = sbr.rel (%p164) target = $region20
      $region19: #{gpt2_attention_forward.4} parent=15 // pred_region
        %s167 = sld [smem:[#allocation7 + %s21]]
        %s168 = sadd.s32 %s20, %s167
        %p169 = scmp.lt.s32.totalorder %s168, 1
        %s170 = scalar_select %p169, %s168, 1
        %s171 = smul.addr %s170, 4
        %s172 = scalar_lea.vmem %s2, %s171
        %s173 = sld [smem:[#allocation7 + %s21]]
        %s174 = sadd.s32 %s20, %s173
      $region20: #{gpt2_attention_forward.4} parent=15 // pred_fallthru
        _
      // Predicated region
      $region21: #{gpt2_attention_forward.4} parent=15 // pred_check
        %p175 = pneg %p79
      $region22: #{gpt2_attention_forward.4} parent=15 // pred_check_branch
        %177 = sbr.rel (%p175) target = $region24
      $region23: #{gpt2_attention_forward.4} parent=15 // pred_region
        %s178 = sld [smem:[#allocation8 + %s21]]
        %s179 = sadd.s32 %s20, %s178
        %p180 = scmp.lt.s32.totalorder %s179, 1
        %s181 = scalar_select %p180, %s179, 1
        %s182 = smul.addr %s181, 4
        %s183 = scalar_lea.vmem %s3, %s182
        %s184 = sld [smem:[#allocation8 + %s21]]
        %s185 = sadd.s32 %s20, %s184
      $region24: #{gpt2_attention_forward.4} parent=15 // pred_fallthru
        _
      // Predicated region
      $region25: #{gpt2_attention_forward.4} parent=15 // pred_check
        %p186 = pneg %p109
      $region26: #{gpt2_attention_forward.4} parent=15 // pred_check_branch
        %188 = sbr.rel (%p186) target = $region28
      $region27: #{gpt2_attention_forward.4} parent=15 // pred_region
        %s189 = sld [smem:[#allocation8 + %s21]]
        %s190 = sadd.s32 %s20, %s189
        %p191 = scmp.lt.s32.totalorder %s190, 1
        %s192 = scalar_select %p191, %s190, 1
        %s193 = smul.addr %s192, 4
        %s194 = scalar_lea.vmem %s4, %s193
        %s195 = sld [smem:[#allocation8 + %s21]]
        %s196 = sadd.s32 %s20, %s195
      $region28: #{gpt2_attention_forward.4} parent=15 // pred_fallthru
        _
    $region16: #{gpt2_attention_forward.4} parent=5 // pred_fallthru
      _
    %p197 = scmp.le.s32.totalorder 1, %s13
    %p198 = scmp.lt.s32.totalorder %s13, 3
    %p199 = pnand %p197, %p198
    %p200 = pneg %p199
    // Predicated region
    $region29: #{gpt2_attention_forward.4} parent=5 // pred_check
      _
    $region30: #{gpt2_attention_forward.4} parent=5 // pred_check_branch
      %202 = sbr.rel (%p199) target = $region32
    $region31: #{gpt2_attention_forward.4} parent=5 // pred_region
      %s203 = ssub.s32 %s13, 1
      %s204 = sld [smem:[#allocation7 + %s23]]
      %s205 = sadd.s32 %s22, %s204
      %p206 = scmp.lt.s32.totalorder %s205, 1
      %s207 = scalar_select %p206, %s205, 1
      %s208 = smul.addr %s207, 4
      %s209 = scalar_lea.vmem %s2, %s208
      %p210 = pneg %p55
      %p211 = pneg %p52
      %s212 = sld [smem:[#allocation8 + %s23]]
      %s213 = sadd.s32 %s22, %s212
      %p214 = scmp.lt.s32.totalorder %s213, 1
      %s215 = scalar_select %p214, %s213, 1
      %s216 = smul.addr %s215, 4
      %s217 = scalar_lea.vmem %s3, %s216
      %p218 = pneg %p85
      %p219 = pneg %p82
      %s220 = sld [smem:[#allocation8 + %s23]]
      %s221 = sadd.s32 %s22, %s220
      %p222 = scmp.lt.s32.totalorder %s221, 1
      %s223 = scalar_select %p222, %s221, 1
      %s224 = smul.addr %s223, 4
      %s225 = scalar_lea.vmem %s4, %s224
      %p226 = pneg %p115
      %p227 = pneg %p112
      %p228 = pneg %p145
      %p229 = pneg %p142
      %s230 = sld [smem:[#allocation7 + %s23]]
      %s231 = sadd.s32 %s22, %s230
      %p232 = scmp.lt.s32.totalorder %s231, 1
      %s233 = scalar_select %p232, %s231, 1
      %s234 = smul.addr %s233, 4
      %s235 = scalar_lea.vmem %s5, %s234
      %s236 = sld [smem:[#allocation7 + %s23]]
      %s237 = sadd.s32 %s22, %s236
      %p238 = scmp.lt.s32.totalorder %s237, 1
      %s239 = scalar_select %p238, %s237, 1
      %s240 = smul.addr %s239, 4
      %s241 = scalar_lea.vmem %s2, %s240
      %s242 = sld [smem:[#allocation7 + %s23]]
      %s243 = sadd.s32 %s22, %s242
      %s244 = sld [smem:[#allocation8 + %s23]]
      %s245 = sadd.s32 %s22, %s244
      %p246 = scmp.lt.s32.totalorder %s245, 1
      %s247 = scalar_select %p246, %s245, 1
      %s248 = smul.addr %s247, 4
      %s249 = scalar_lea.vmem %s3, %s248
      %s250 = sld [smem:[#allocation8 + %s23]]
      %s251 = sadd.s32 %s22, %s250
      %s252 = sld [smem:[#allocation8 + %s23]]
      %s253 = sadd.s32 %s22, %s252
      %p254 = scmp.lt.s32.totalorder %s253, 1
      %s255 = scalar_select %p254, %s253, 1
      %s256 = smul.addr %s255, 4
      %s257 = scalar_lea.vmem %s4, %s256
      %s258 = sld [smem:[#allocation8 + %s23]]
      %s259 = sadd.s32 %s22, %s258
      %s260 = sld [smem:[#allocation7 + %s23]]
      %s261 = sadd.s32 %s22, %s260
      %p262 = scmp.lt.s32.totalorder %s261, 1
      %s263 = scalar_select %p262, %s261, 1
      %s264 = smul.addr %s263, 4
      %s265 = scalar_lea.vmem %s5, %s264
      %s266 = sld [smem:[#allocation7 + %s23]]
      %s267 = sadd.s32 %s22, %s266
      %s269 = sld [smem:[#allocation7 + %s23]]
      %s270 = sld [smem:[#allocation8 + %s23]]
      %p271 = scmp.eq.s32.totalorder %s270, 0
      // Predicated region
      $region33: #{gpt2_attention_forward.4} parent=31 // pred_check
        %p272 = pneg %p271
      $region34: #{gpt2_attention_forward.4} parent=31 // pred_check_branch
        %274 = sbr.rel (%p272) target = $region36
      $region35: #{gpt2_attention_forward.4} parent=31 // pred_region
        %v275 = vld [vmem:[%s241] sm:$0xf]
        %v276 = vunpack.c.l.bf16 %v275
        %v277 = vmul.f32 %v276, 0.35351563
        %v278 = vpack.c.bf16 %v277, %v277
        %vm279 = vcmask 257024
        %280 = vst.msk [vmem:[#allocation2] sm:$0xf] %vm279, %v278
        %vm281 = vcmask 7168
        %282 = vst.msk [vmem:[#allocation3] sm:$0xff] %vm281, -inf
        %283 = vst.msk [vmem:[#allocation3 + $0x8] sm:$0xff] %vm281, -inf
        %284 = vst.msk [vmem:[#allocation3 + $0x10] sm:$0xff] %vm281, -inf
        %285 = vst.msk [vmem:[#allocation3 + $0x18] sm:$0xff] %vm281, -inf
        %286 = vst.msk [vmem:[#allocation4] sm:$0xff] %vm281, 0.0
        %287 = vst.msk [vmem:[#allocation4 + $0x8] sm:$0xff] %vm281, 0.0
        %288 = vst.msk [vmem:[#allocation4 + $0x10] sm:$0xff] %vm281, 0.0
        %289 = vst.msk [vmem:[#allocation4 + $0x18] sm:$0xff] %vm281, 0.0
        %vm290 = vcmask 64512
        %291 = vst.msk [vmem:[#allocation5] sm:$0xff] %vm290, 0.0
        %292 = vst.msk [vmem:[#allocation5 + $0x8] sm:$0xff] %vm290, 0.0
        %293 = vst.msk [vmem:[#allocation5 + $0x10] sm:$0xff] %vm290, 0.0
        %294 = vst.msk [vmem:[#allocation5 + $0x18] sm:$0xff] %vm290, 0.0
      $region36: #{gpt2_attention_forward.4} parent=31 // pred_fallthru
        _
      %p295 = scmp.lt.s32.totalorder %s270, %s269
      // Predicated region
      $region37: #{gpt2_attention_forward.4} parent=31 // pred_check
        %p296 = pneg %p295
      $region38: #{gpt2_attention_forward.4} parent=31 // pred_check_branch
        %298 = sbr.rel (%p296) target = $region40
      $region39: #{gpt2_attention_forward.4} parent=31 // pred_region
        %v299 = vld [vmem:[%s249] sm:$0xf]
        %v300 = vld [vmem:[%s257] sm:$0xf]
        %v301 = vld [vmem:[#allocation2] sm:$0xf]
        %vm302 = vcmask 64512
        %v304 = vsel %vm302, %v301, 0
        %v307 = vsel %vm302, %v299, 0
        %309 = vmatpush.bf16.xpose.msra.mxu0 0
        %310 = vmatpush.bf16.xpose.msra.mxu0 0
        %311 = vmatpush.bf16.xpose.msra.mxu0 0
        %312 = vmatpush.bf16.xpose.msra.mxu0 0
        %313 = vmatpush.bf16.xpose.msra.mxu0 0
        %314 = vmatpush.bf16.xpose.msra.mxu0 0
        %315 = vmatpush.bf16.xpose.msra.mxu0 0
        %316 = vmatpush.bf16.xpose.msra.mxu0 %v307
        %317 = vmatmul.bf16.gmra.mxu0 %v304
        %v318 = vpop.f32.mrf.mxu0
        %v319 = vadd.f32 0.0, %v318
        %v320 = vpop.f32.mrf.mxu0
        %321 = vdwg.mxu0
        %v322 = vld [vmem:[#allocation3] sm:$0xff]
        %v323 = vsel %vm302, %v319, -inf
        %324 = vmax.xlane.f32.xlu0 %v323
        %v325 = vpop.xlane.xlu0 %324
        %v326 = vmax.f32 %v322, %v325
        %v327 = vsub.f32 %v322, %v326
        %v328 = vmul.f32 %v327, 1.442695
        %v329 = vpow.pop %v328
        %331 = vset.pattern.permute.xlu0 0
        %332 = vperm.xlu0 %331, %v326
        %v333 = vpop.permute.xlu0 %332
        %v335 = vsub.f32 %v319, %v333
        %v336 = vmul.f32 %v335, 1.442695
        %v337 = vpow.pop %v336
        %v338 = vld [vmem:[#allocation4] sm:$0xff]
        %v339 = vmul.f32 %v329, %v338
        %v340 = vsel %vm302, %v337, 0.0
        %341 = vadd.xlane.f32.xlu0 %v340
        %v342 = vpop.xlane.xlu0 %341
        %v343 = vadd.f32 %v339, %v342
        %vm344 = vcmask 7168
        %345 = vst.msk [vmem:[#allocation4] sm:$0xff] %vm344, %v343
        %v346 = vld [vmem:[#allocation5] sm:$0xff]
        %348 = vset.pattern.permute.xlu0 0
        %349 = vperm.xlu0 %348, %v329
        %v350 = vpop.permute.xlu0 %349
        %v352 = vmul.f32 %v350, %v346
        %v353 = vpack.c.bf16 %v337, %v337
        %v355 = vsel %vm302, %v353, 0
        %vm357 = vcmask 1043456
        %v359 = vsel %vm357, %v300, 0
        %361 = vmatpush.bf16.msra.mxu0 0
        %362 = vmatpush.bf16.msra.mxu0 0
        %363 = vmatpush.bf16.msra.mxu0 0
        %364 = vmatpush.bf16.msra.mxu0 0
        %365 = vmatpush.bf16.msra.mxu0 0
        %366 = vmatpush.bf16.msra.mxu0 0
        %367 = vmatpush.bf16.msra.mxu0 0
        %368 = vmatpush.bf16.msra.mxu0 %v359
        %369 = vmatmul.bf16.gmra.mxu0 %v355
        %v370 = vpop.f32.mrf.mxu0
        %v371 = vadd.f32 0.0, %v370
        %v372 = vpop.f32.mrf.mxu0
        %373 = vdwg.mxu0
        %v374 = vadd.f32 %v352, %v371
        %375 = vst.msk [vmem:[#allocation5] sm:$0xff] %vm302, %v374
        %376 = vst.msk [vmem:[#allocation3] sm:$0xff] %vm344, %v326
        %v377 = vld [vmem:[#allocation2] sm:$0xf]
        %v379 = vunpack.c.l.b16 %v377
        %v380 = vpack.c.b16 %v379, %v379
        %381 = vrot.lane.b32.xlu0 %v380, 120
        %v382 = vpop.permute.xlu0 %381
        %v384 = vunpack.c.l.b16 %v299
        %v385 = vpack.c.b16 %v384, %v384
        %386 = vrot.lane.b32.xlu0 %v385, 120
        %v387 = vpop.permute.xlu0 %386
        %v389 = vsel %vm302, %v382, 0
        %v392 = vsel %vm302, %v387, 0
        %394 = vmatpush.bf16.xpose.msra.mxu0 0
        %395 = vmatpush.bf16.xpose.msra.mxu0 0
        %396 = vmatpush.bf16.xpose.msra.mxu0 0
        %397 = vmatpush.bf16.xpose.msra.mxu0 0
        %398 = vmatpush.bf16.xpose.msra.mxu0 0
        %399 = vmatpush.bf16.xpose.msra.mxu0 0
        %400 = vmatpush.bf16.xpose.msra.mxu0 0
        %401 = vmatpush.bf16.xpose.msra.mxu0 %v392
        %402 = vmatmul.bf16.gmra.mxu0 %v389
        %v403 = vpop.f32.mrf.mxu0
        %v404 = vadd.f32 0.0, %v403
        %v405 = vpop.f32.mrf.mxu0
        %406 = vdwg.mxu0
        %s407 = scalar_lea.vmem [#allocation3], 8
        %v408 = vld [vmem:[%s407] sm:$0xff]
        %v409 = vsel %vm302, %v404, -inf
        %410 = vmax.xlane.f32.xlu0 %v409
        %v411 = vpop.xlane.xlu0 %410
        %v412 = vmax.f32 %v408, %v411
        %v413 = vsub.f32 %v408, %v412
        %v414 = vmul.f32 %v413, 1.442695
        %v415 = vpow.pop %v414
        %417 = vset.pattern.permute.xlu0 0
        %418 = vperm.xlu0 %417, %v412
        %v419 = vpop.permute.xlu0 %418
        %v421 = vsub.f32 %v404, %v419
        %v422 = vmul.f32 %v421, 1.442695
        %v423 = vpow.pop %v422
        %s424 = scalar_lea.vmem [#allocation4], 8
        %v425 = vld [vmem:[%s424] sm:$0xff]
        %v426 = vmul.f32 %v415, %v425
        %v427 = vsel %vm302, %v423, 0.0
        %428 = vadd.xlane.f32.xlu0 %v427
        %v429 = vpop.xlane.xlu0 %428
        %v430 = vadd.f32 %v426, %v429
        %431 = vst.msk [vmem:[%s424] sm:$0xff] %vm344, %v430
        %s432 = scalar_lea.vmem [#allocation5], 8
        %v433 = vld [vmem:[%s432] sm:$0xff]
        %435 = vset.pattern.permute.xlu0 0
        %436 = vperm.xlu0 %435, %v415
        %v437 = vpop.permute.xlu0 %436
        %v439 = vmul.f32 %v437, %v433
        %v440 = vpack.c.bf16 %v423, %v423
        %v442 = vunpack.c.l.b16 %v300
        %v443 = vpack.c.b16 %v442, %v442
        %444 = vrot.lane.b32.xlu0 %v443, 120
        %v445 = vpop.permute.xlu0 %444
        %v447 = vsel %vm302, %v440, 0
        %v450 = vsel %vm357, %v445, 0
        %452 = vmatpush.bf16.msra.mxu0 0
        %453 = vmatpush.bf16.msra.mxu0 0
        %454 = vmatpush.bf16.msra.mxu0 0
        %455 = vmatpush.bf16.msra.mxu0 0
        %456 = vmatpush.bf16.msra.mxu0 0
        %457 = vmatpush.bf16.msra.mxu0 0
        %458 = vmatpush.bf16.msra.mxu0 0
        %459 = vmatpush.bf16.msra.mxu0 %v450
        %460 = vmatmul.bf16.gmra.mxu0 %v447
        %v461 = vpop.f32.mrf.mxu0
        %v462 = vadd.f32 0.0, %v461
        %v463 = vpop.f32.mrf.mxu0
        %464 = vdwg.mxu0
        %v465 = vadd.f32 %v439, %v462
        %466 = vst.msk [vmem:[%s432] sm:$0xff] %vm302, %v465
        %467 = vst.msk [vmem:[%s407] sm:$0xff] %vm344, %v412
        %v468 = vld [vmem:[#allocation2] sm:$0xf]
        %v470 = vunpack.c.l.b16 %v468
        %v471 = vpack.c.b16 %v470, %v470
        %472 = vrot.lane.b32.xlu0 %v471, 112
        %v473 = vpop.permute.xlu0 %472
        %474 = vrot.lane.b32.xlu0 %v385, 112
        %v475 = vpop.permute.xlu0 %474
        %v477 = vsel %vm302, %v473, 0
        %v480 = vsel %vm302, %v475, 0
        %482 = vmatpush.bf16.xpose.msra.mxu0 0
        %483 = vmatpush.bf16.xpose.msra.mxu0 0
        %484 = vmatpush.bf16.xpose.msra.mxu0 0
        %485 = vmatpush.bf16.xpose.msra.mxu0 0
        %486 = vmatpush.bf16.xpose.msra.mxu0 0
        %487 = vmatpush.bf16.xpose.msra.mxu0 0
        %488 = vmatpush.bf16.xpose.msra.mxu0 0
        %489 = vmatpush.bf16.xpose.msra.mxu0 %v480
        %490 = vmatmul.bf16.gmra.mxu0 %v477
        %v491 = vpop.f32.mrf.mxu0
        %v492 = vadd.f32 0.0, %v491
        %v493 = vpop.f32.mrf.mxu0
        %494 = vdwg.mxu0
        %s495 = scalar_lea.vmem [#allocation3], 16
        %v496 = vld [vmem:[%s495] sm:$0xff]
        %v497 = vsel %vm302, %v492, -inf
        %498 = vmax.xlane.f32.xlu0 %v497
        %v499 = vpop.xlane.xlu0 %498
        %v500 = vmax.f32 %v496, %v499
        %v501 = vsub.f32 %v496, %v500
        %v502 = vmul.f32 %v501, 1.442695
        %v503 = vpow.pop %v502
        %505 = vset.pattern.permute.xlu0 0
        %506 = vperm.xlu0 %505, %v500
        %v507 = vpop.permute.xlu0 %506
        %v509 = vsub.f32 %v492, %v507
        %v510 = vmul.f32 %v509, 1.442695
        %v511 = vpow.pop %v510
        %s512 = scalar_lea.vmem [#allocation4], 16
        %v513 = vld [vmem:[%s512] sm:$0xff]
        %v514 = vmul.f32 %v503, %v513
        %v515 = vsel %vm302, %v511, 0.0
        %516 = vadd.xlane.f32.xlu0 %v515
        %v517 = vpop.xlane.xlu0 %516
        %v518 = vadd.f32 %v514, %v517
        %519 = vst.msk [vmem:[%s512] sm:$0xff] %vm344, %v518
        %s520 = scalar_lea.vmem [#allocation5], 16
        %v521 = vld [vmem:[%s520] sm:$0xff]
        %523 = vset.pattern.permute.xlu0 0
        %524 = vperm.xlu0 %523, %v503
        %v525 = vpop.permute.xlu0 %524
        %v527 = vmul.f32 %v525, %v521
        %v528 = vpack.c.bf16 %v511, %v511
        %529 = vrot.lane.b32.xlu0 %v443, 112
        %v530 = vpop.permute.xlu0 %529
        %v532 = vsel %vm302, %v528, 0
        %v535 = vsel %vm357, %v530, 0
        %537 = vmatpush.bf16.msra.mxu0 0
        %538 = vmatpush.bf16.msra.mxu0 0
        %539 = vmatpush.bf16.msra.mxu0 0
        %540 = vmatpush.bf16.msra.mxu0 0
        %541 = vmatpush.bf16.msra.mxu0 0
        %542 = vmatpush.bf16.msra.mxu0 0
        %543 = vmatpush.bf16.msra.mxu0 0
        %544 = vmatpush.bf16.msra.mxu0 %v535
        %545 = vmatmul.bf16.gmra.mxu0 %v532
        %v546 = vpop.f32.mrf.mxu0
        %v547 = vadd.f32 0.0, %v546
        %v548 = vpop.f32.mrf.mxu0
        %549 = vdwg.mxu0
        %v550 = vadd.f32 %v527, %v547
        %551 = vst.msk [vmem:[%s520] sm:$0xff] %vm302, %v550
        %552 = vst.msk [vmem:[%s495] sm:$0xff] %vm344, %v500
        %v553 = vld [vmem:[#allocation2] sm:$0xf]
        %v555 = vunpack.c.l.b16 %v553
        %v556 = vpack.c.b16 %v555, %v555
        %557 = vrot.lane.b32.xlu0 %v556, 104
        %v558 = vpop.permute.xlu0 %557
        %559 = vrot.lane.b32.xlu0 %v385, 104
        %v560 = vpop.permute.xlu0 %559
        %v562 = vsel %vm302, %v558, 0
        %v565 = vsel %vm302, %v560, 0
        %567 = vmatpush.bf16.xpose.msra.mxu0 0
        %568 = vmatpush.bf16.xpose.msra.mxu0 0
        %569 = vmatpush.bf16.xpose.msra.mxu0 0
        %570 = vmatpush.bf16.xpose.msra.mxu0 0
        %571 = vmatpush.bf16.xpose.msra.mxu0 0
        %572 = vmatpush.bf16.xpose.msra.mxu0 0
        %573 = vmatpush.bf16.xpose.msra.mxu0 0
        %574 = vmatpush.bf16.xpose.msra.mxu0 %v565
        %575 = vmatmul.bf16.gmra.mxu0 %v562
        %v576 = vpop.f32.mrf.mxu0
        %v577 = vadd.f32 0.0, %v576
        %v578 = vpop.f32.mrf.mxu0
        %579 = vdwg.mxu0
        %s580 = scalar_lea.vmem [#allocation3], 24
        %v581 = vld [vmem:[%s580] sm:$0xff]
        %v582 = vsel %vm302, %v577, -inf
        %583 = vmax.xlane.f32.xlu0 %v582
        %v584 = vpop.xlane.xlu0 %583
        %v585 = vmax.f32 %v581, %v584
        %v586 = vsub.f32 %v581, %v585
        %v587 = vmul.f32 %v586, 1.442695
        %v588 = vpow.pop %v587
        %590 = vset.pattern.permute.xlu0 0
        %591 = vperm.xlu0 %590, %v585
        %v592 = vpop.permute.xlu0 %591
        %v594 = vsub.f32 %v577, %v592
        %v595 = vmul.f32 %v594, 1.442695
        %v596 = vpow.pop %v595
        %s597 = scalar_lea.vmem [#allocation4], 24
        %v598 = vld [vmem:[%s597] sm:$0xff]
        %v599 = vmul.f32 %v588, %v598
        %v600 = vsel %vm302, %v596, 0.0
        %601 = vadd.xlane.f32.xlu0 %v600
        %v602 = vpop.xlane.xlu0 %601
        %v603 = vadd.f32 %v599, %v602
        %604 = vst.msk [vmem:[%s597] sm:$0xff] %vm344, %v603
        %s605 = scalar_lea.vmem [#allocation5], 24
        %v606 = vld [vmem:[%s605] sm:$0xff]
        %608 = vset.pattern.permute.xlu0 0
        %609 = vperm.xlu0 %608, %v588
        %v610 = vpop.permute.xlu0 %609
        %v612 = vmul.f32 %v610, %v606
        %v613 = vpack.c.bf16 %v596, %v596
        %614 = vrot.lane.b32.xlu0 %v443, 104
        %v615 = vpop.permute.xlu0 %614
        %v617 = vsel %vm302, %v613, 0
        %v620 = vsel %vm357, %v615, 0
        %622 = vmatpush.bf16.msra.mxu0 0
        %623 = vmatpush.bf16.msra.mxu0 0
        %624 = vmatpush.bf16.msra.mxu0 0
        %625 = vmatpush.bf16.msra.mxu0 0
        %626 = vmatpush.bf16.msra.mxu0 0
        %627 = vmatpush.bf16.msra.mxu0 0
        %628 = vmatpush.bf16.msra.mxu0 0
        %629 = vmatpush.bf16.msra.mxu0 %v620
        %630 = vmatmul.bf16.gmra.mxu0 %v617
        %v631 = vpop.f32.mrf.mxu0
        %v632 = vadd.f32 0.0, %v631
        %v633 = vpop.f32.mrf.mxu0
        %634 = vdwg.mxu0
        %v635 = vadd.f32 %v612, %v632
        %636 = vst.msk [vmem:[%s605] sm:$0xff] %vm302, %v635
        %637 = vst.msk [vmem:[%s580] sm:$0xff] %vm344, %v585
      $region40: #{gpt2_attention_forward.4} parent=31 // pred_fallthru
        _
      %p638 = scmp.eq.s32.totalorder %s270, %s269
      // Predicated region
      $region41: #{gpt2_attention_forward.4} parent=31 // pred_check
        %p639 = pneg %p638
      $region42: #{gpt2_attention_forward.4} parent=31 // pred_check_branch
        %641 = sbr.rel (%p639) target = $region44
      $region43: #{gpt2_attention_forward.4} parent=31 // pred_region
        %v642 = vld [vmem:[%s249] sm:$0xf]
        %v643 = vld [vmem:[%s257] sm:$0xf]
        %v644 = vld [vmem:[#allocation2] sm:$0xf]
        %vm645 = vcmask 64512
        %v647 = vsel %vm645, %v644, 0
        %v650 = vsel %vm645, %v642, 0
        %652 = vmatpush.bf16.xpose.msra.mxu0 0
        %653 = vmatpush.bf16.xpose.msra.mxu0 0
        %654 = vmatpush.bf16.xpose.msra.mxu0 0
        %655 = vmatpush.bf16.xpose.msra.mxu0 0
        %656 = vmatpush.bf16.xpose.msra.mxu0 0
        %657 = vmatpush.bf16.xpose.msra.mxu0 0
        %658 = vmatpush.bf16.xpose.msra.mxu0 0
        %659 = vmatpush.bf16.xpose.msra.mxu0 %v650
        %660 = vmatmul.bf16.gmra.mxu0 %v647
        %v661 = vpop.f32.mrf.mxu0
        %v662 = vadd.f32 0.0, %v661
        %v663 = vpop.f32.mrf.mxu0
        %664 = vdwg.mxu0
        %v665 = vlaneseq
        %v666 = vshrl.u32 %v665, 7
        %v667 = vlaneseq
        %v668 = vand.u32 %v667, 127
        %vm669 = vcmp.le.s32.totalorder %v668, %v666
        %v670 = vsel %vm669, %v662, -inf
        %v671 = vld [vmem:[#allocation3] sm:$0xff]
        %v672 = vsel %vm645, %v670, -inf
        %673 = vmax.xlane.f32.xlu0 %v672
        %v674 = vpop.xlane.xlu0 %673
        %v675 = vmax.f32 %v671, %v674
        %v676 = vsub.f32 %v671, %v675
        %v677 = vmul.f32 %v676, 1.442695
        %v678 = vpow.pop %v677
        %680 = vset.pattern.permute.xlu0 0
        %681 = vperm.xlu0 %680, %v675
        %v682 = vpop.permute.xlu0 %681
        %v684 = vsub.f32 %v670, %v682
        %v685 = vmul.f32 %v684, 1.442695
        %v686 = vpow.pop %v685
        %v687 = vld [vmem:[#allocation4] sm:$0xff]
        %v688 = vmul.f32 %v678, %v687
        %v689 = vsel %vm645, %v686, 0.0
        %690 = vadd.xlane.f32.xlu0 %v689
        %v691 = vpop.xlane.xlu0 %690
        %v692 = vadd.f32 %v688, %v691
        %vm693 = vcmask 7168
        %694 = vst.msk [vmem:[#allocation4] sm:$0xff] %vm693, %v692
        %v695 = vld [vmem:[#allocation5] sm:$0xff]
        %697 = vset.pattern.permute.xlu0 0
        %698 = vperm.xlu0 %697, %v678
        %v699 = vpop.permute.xlu0 %698
        %v701 = vmul.f32 %v699, %v695
        %v702 = vpack.c.bf16 %v686, %v686
        %v704 = vsel %vm645, %v702, 0
        %vm706 = vcmask 1043456
        %v708 = vsel %vm706, %v643, 0
        %710 = vmatpush.bf16.msra.mxu0 0
        %711 = vmatpush.bf16.msra.mxu0 0
        %712 = vmatpush.bf16.msra.mxu0 0
        %713 = vmatpush.bf16.msra.mxu0 0
        %714 = vmatpush.bf16.msra.mxu0 0
        %715 = vmatpush.bf16.msra.mxu0 0
        %716 = vmatpush.bf16.msra.mxu0 0
        %717 = vmatpush.bf16.msra.mxu0 %v708
        %718 = vmatmul.bf16.gmra.mxu0 %v704
        %v719 = vpop.f32.mrf.mxu0
        %v720 = vadd.f32 0.0, %v719
        %v721 = vpop.f32.mrf.mxu0
        %722 = vdwg.mxu0
        %v723 = vadd.f32 %v701, %v720
        %724 = vst.msk [vmem:[#allocation5] sm:$0xff] %vm645, %v723
        %725 = vst.msk [vmem:[#allocation3] sm:$0xff] %vm693, %v675
        %v726 = vld [vmem:[#allocation2] sm:$0xf]
        %v728 = vunpack.c.l.b16 %v726
        %v729 = vpack.c.b16 %v728, %v728
        %730 = vrot.lane.b32.xlu0 %v729, 120
        %v731 = vpop.permute.xlu0 %730
        %v733 = vunpack.c.l.b16 %v642
        %v734 = vpack.c.b16 %v733, %v733
        %735 = vrot.lane.b32.xlu0 %v734, 120
        %v736 = vpop.permute.xlu0 %735
        %v738 = vsel %vm645, %v731, 0
        %v741 = vsel %vm645, %v736, 0
        %743 = vmatpush.bf16.xpose.msra.mxu0 0
        %744 = vmatpush.bf16.xpose.msra.mxu0 0
        %745 = vmatpush.bf16.xpose.msra.mxu0 0
        %746 = vmatpush.bf16.xpose.msra.mxu0 0
        %747 = vmatpush.bf16.xpose.msra.mxu0 0
        %748 = vmatpush.bf16.xpose.msra.mxu0 0
        %749 = vmatpush.bf16.xpose.msra.mxu0 0
        %750 = vmatpush.bf16.xpose.msra.mxu0 %v741
        %751 = vmatmul.bf16.gmra.mxu0 %v738
        %v752 = vpop.f32.mrf.mxu0
        %v753 = vadd.f32 0.0, %v752
        %v754 = vpop.f32.mrf.mxu0
        %755 = vdwg.mxu0
        %v756 = vsel %vm669, %v753, -inf
        %s757 = scalar_lea.vmem [#allocation3], 8
        %v758 = vld [vmem:[%s757] sm:$0xff]
        %v759 = vsel %vm645, %v756, -inf
        %760 = vmax.xlane.f32.xlu0 %v759
        %v761 = vpop.xlane.xlu0 %760
        %v762 = vmax.f32 %v758, %v761
        %v763 = vsub.f32 %v758, %v762
        %v764 = vmul.f32 %v763, 1.442695
        %v765 = vpow.pop %v764
        %767 = vset.pattern.permute.xlu0 0
        %768 = vperm.xlu0 %767, %v762
        %v769 = vpop.permute.xlu0 %768
        %v771 = vsub.f32 %v756, %v769
        %v772 = vmul.f32 %v771, 1.442695
        %v773 = vpow.pop %v772
        %s774 = scalar_lea.vmem [#allocation4], 8
        %v775 = vld [vmem:[%s774] sm:$0xff]
        %v776 = vmul.f32 %v765, %v775
        %v777 = vsel %vm645, %v773, 0.0
        %778 = vadd.xlane.f32.xlu0 %v777
        %v779 = vpop.xlane.xlu0 %778
        %v780 = vadd.f32 %v776, %v779
        %781 = vst.msk [vmem:[%s774] sm:$0xff] %vm693, %v780
        %s782 = scalar_lea.vmem [#allocation5], 8
        %v783 = vld [vmem:[%s782] sm:$0xff]
        %785 = vset.pattern.permute.xlu0 0
        %786 = vperm.xlu0 %785, %v765
        %v787 = vpop.permute.xlu0 %786
        %v789 = vmul.f32 %v787, %v783
        %v790 = vpack.c.bf16 %v773, %v773
        %v792 = vunpack.c.l.b16 %v643
        %v793 = vpack.c.b16 %v792, %v792
        %794 = vrot.lane.b32.xlu0 %v793, 120
        %v795 = vpop.permute.xlu0 %794
        %v797 = vsel %vm645, %v790, 0
        %v800 = vsel %vm706, %v795, 0
        %802 = vmatpush.bf16.msra.mxu0 0
        %803 = vmatpush.bf16.msra.mxu0 0
        %804 = vmatpush.bf16.msra.mxu0 0
        %805 = vmatpush.bf16.msra.mxu0 0
        %806 = vmatpush.bf16.msra.mxu0 0
        %807 = vmatpush.bf16.msra.mxu0 0
        %808 = vmatpush.bf16.msra.mxu0 0
        %809 = vmatpush.bf16.msra.mxu0 %v800
        %810 = vmatmul.bf16.gmra.mxu0 %v797
        %v811 = vpop.f32.mrf.mxu0
        %v812 = vadd.f32 0.0, %v811
        %v813 = vpop.f32.mrf.mxu0
        %814 = vdwg.mxu0
        %v815 = vadd.f32 %v789, %v812
        %816 = vst.msk [vmem:[%s782] sm:$0xff] %vm645, %v815
        %817 = vst.msk [vmem:[%s757] sm:$0xff] %vm693, %v762
        %v818 = vld [vmem:[#allocation2] sm:$0xf]
        %v820 = vunpack.c.l.b16 %v818
        %v821 = vpack.c.b16 %v820, %v820
        %822 = vrot.lane.b32.xlu0 %v821, 112
        %v823 = vpop.permute.xlu0 %822
        %824 = vrot.lane.b32.xlu0 %v734, 112
        %v825 = vpop.permute.xlu0 %824
        %v827 = vsel %vm645, %v823, 0
        %v830 = vsel %vm645, %v825, 0
        %832 = vmatpush.bf16.xpose.msra.mxu0 0
        %833 = vmatpush.bf16.xpose.msra.mxu0 0
        %834 = vmatpush.bf16.xpose.msra.mxu0 0
        %835 = vmatpush.bf16.xpose.msra.mxu0 0
        %836 = vmatpush.bf16.xpose.msra.mxu0 0
        %837 = vmatpush.bf16.xpose.msra.mxu0 0
        %838 = vmatpush.bf16.xpose.msra.mxu0 0
        %839 = vmatpush.bf16.xpose.msra.mxu0 %v830
        %840 = vmatmul.bf16.gmra.mxu0 %v827
        %v841 = vpop.f32.mrf.mxu0
        %v842 = vadd.f32 0.0, %v841
        %v843 = vpop.f32.mrf.mxu0
        %844 = vdwg.mxu0
        %v845 = vsel %vm669, %v842, -inf
        %s846 = scalar_lea.vmem [#allocation3], 16
        %v847 = vld [vmem:[%s846] sm:$0xff]
        %v848 = vsel %vm645, %v845, -inf
        %849 = vmax.xlane.f32.xlu0 %v848
        %v850 = vpop.xlane.xlu0 %849
        %v851 = vmax.f32 %v847, %v850
        %v852 = vsub.f32 %v847, %v851
        %v853 = vmul.f32 %v852, 1.442695
        %v854 = vpow.pop %v853
        %856 = vset.pattern.permute.xlu0 0
        %857 = vperm.xlu0 %856, %v851
        %v858 = vpop.permute.xlu0 %857
        %v860 = vsub.f32 %v845, %v858
        %v861 = vmul.f32 %v860, 1.442695
        %v862 = vpow.pop %v861
        %s863 = scalar_lea.vmem [#allocation4], 16
        %v864 = vld [vmem:[%s863] sm:$0xff]
        %v865 = vmul.f32 %v854, %v864
        %v866 = vsel %vm645, %v862, 0.0
        %867 = vadd.xlane.f32.xlu0 %v866
        %v868 = vpop.xlane.xlu0 %867
        %v869 = vadd.f32 %v865, %v868
        %870 = vst.msk [vmem:[%s863] sm:$0xff] %vm693, %v869
        %s871 = scalar_lea.vmem [#allocation5], 16
        %v872 = vld [vmem:[%s871] sm:$0xff]
        %874 = vset.pattern.permute.xlu0 0
        %875 = vperm.xlu0 %874, %v854
        %v876 = vpop.permute.xlu0 %875
        %v878 = vmul.f32 %v876, %v872
        %v879 = vpack.c.bf16 %v862, %v862
        %880 = vrot.lane.b32.xlu0 %v793, 112
        %v881 = vpop.permute.xlu0 %880
        %v883 = vsel %vm645, %v879, 0
        %v886 = vsel %vm706, %v881, 0
        %888 = vmatpush.bf16.msra.mxu0 0
        %889 = vmatpush.bf16.msra.mxu0 0
        %890 = vmatpush.bf16.msra.mxu0 0
        %891 = vmatpush.bf16.msra.mxu0 0
        %892 = vmatpush.bf16.msra.mxu0 0
        %893 = vmatpush.bf16.msra.mxu0 0
        %894 = vmatpush.bf16.msra.mxu0 0
        %895 = vmatpush.bf16.msra.mxu0 %v886
        %896 = vmatmul.bf16.gmra.mxu0 %v883
        %v897 = vpop.f32.mrf.mxu0
        %v898 = vadd.f32 0.0, %v897
        %v899 = vpop.f32.mrf.mxu0
        %900 = vdwg.mxu0
        %v901 = vadd.f32 %v878, %v898
        %902 = vst.msk [vmem:[%s871] sm:$0xff] %vm645, %v901
        %903 = vst.msk [vmem:[%s846] sm:$0xff] %vm693, %v851
        %v904 = vld [vmem:[#allocation2] sm:$0xf]
        %v906 = vunpack.c.l.b16 %v904
        %v907 = vpack.c.b16 %v906, %v906
        %908 = vrot.lane.b32.xlu0 %v907, 104
        %v909 = vpop.permute.xlu0 %908
        %910 = vrot.lane.b32.xlu0 %v734, 104
        %v911 = vpop.permute.xlu0 %910
        %v913 = vsel %vm645, %v909, 0
        %v916 = vsel %vm645, %v911, 0
        %918 = vmatpush.bf16.xpose.msra.mxu0 0
        %919 = vmatpush.bf16.xpose.msra.mxu0 0
        %920 = vmatpush.bf16.xpose.msra.mxu0 0
        %921 = vmatpush.bf16.xpose.msra.mxu0 0
        %922 = vmatpush.bf16.xpose.msra.mxu0 0
        %923 = vmatpush.bf16.xpose.msra.mxu0 0
        %924 = vmatpush.bf16.xpose.msra.mxu0 0
        %925 = vmatpush.bf16.xpose.msra.mxu0 %v916
        %926 = vmatmul.bf16.gmra.mxu0 %v913
        %v927 = vpop.f32.mrf.mxu0
        %v928 = vadd.f32 0.0, %v927
        %v929 = vpop.f32.mrf.mxu0
        %930 = vdwg.mxu0
        %v931 = vsel %vm669, %v928, -inf
        %s932 = scalar_lea.vmem [#allocation3], 24
        %v933 = vld [vmem:[%s932] sm:$0xff]
        %v934 = vsel %vm645, %v931, -inf
        %935 = vmax.xlane.f32.xlu0 %v934
        %v936 = vpop.xlane.xlu0 %935
        %v937 = vmax.f32 %v933, %v936
        %v938 = vsub.f32 %v933, %v937
        %v939 = vmul.f32 %v938, 1.442695
        %v940 = vpow.pop %v939
        %942 = vset.pattern.permute.xlu0 0
        %943 = vperm.xlu0 %942, %v937
        %v944 = vpop.permute.xlu0 %943
        %v946 = vsub.f32 %v931, %v944
        %v947 = vmul.f32 %v946, 1.442695
        %v948 = vpow.pop %v947
        %s949 = scalar_lea.vmem [#allocation4], 24
        %v950 = vld [vmem:[%s949] sm:$0xff]
        %v951 = vmul.f32 %v940, %v950
        %v952 = vsel %vm645, %v948, 0.0
        %953 = vadd.xlane.f32.xlu0 %v952
        %v954 = vpop.xlane.xlu0 %953
        %v955 = vadd.f32 %v951, %v954
        %956 = vst.msk [vmem:[%s949] sm:$0xff] %vm693, %v955
        %s957 = scalar_lea.vmem [#allocation5], 24
        %v958 = vld [vmem:[%s957] sm:$0xff]
        %960 = vset.pattern.permute.xlu0 0
        %961 = vperm.xlu0 %960, %v940
        %v962 = vpop.permute.xlu0 %961
        %v964 = vmul.f32 %v962, %v958
        %v965 = vpack.c.bf16 %v948, %v948
        %966 = vrot.lane.b32.xlu0 %v793, 104
        %v967 = vpop.permute.xlu0 %966
        %v969 = vsel %vm645, %v965, 0
        %v972 = vsel %vm706, %v967, 0
        %974 = vmatpush.bf16.msra.mxu0 0
        %975 = vmatpush.bf16.msra.mxu0 0
        %976 = vmatpush.bf16.msra.mxu0 0
        %977 = vmatpush.bf16.msra.mxu0 0
        %978 = vmatpush.bf16.msra.mxu0 0
        %979 = vmatpush.bf16.msra.mxu0 0
        %980 = vmatpush.bf16.msra.mxu0 0
        %981 = vmatpush.bf16.msra.mxu0 %v972
        %982 = vmatmul.bf16.gmra.mxu0 %v969
        %v983 = vpop.f32.mrf.mxu0
        %v984 = vadd.f32 0.0, %v983
        %v985 = vpop.f32.mrf.mxu0
        %986 = vdwg.mxu0
        %v987 = vadd.f32 %v964, %v984
        %988 = vst.msk [vmem:[%s957] sm:$0xff] %vm645, %v987
        %989 = vst.msk [vmem:[%s932] sm:$0xff] %vm693, %v937
        %v990 = vld [vmem:[#allocation4] sm:$0xff]
        %v991 = vrcp.pop %v990
        %v992 = vld [vmem:[#allocation5] sm:$0xff]
        %994 = vset.pattern.permute.xlu0 0
        %995 = vperm.xlu0 %994, %v991
        %v996 = vpop.permute.xlu0 %995
        %v998 = vmul.f32 %v992, %v996
        %v999 = vpack.c.bf16 %v998, %v998
        %vm1000 = vcmask 60416
        %1001 = vst.msk [vmem:[%s265] sm:$0xf] %vm1000, %v999
        %v1002 = vld [vmem:[%s774] sm:$0xff]
        %v1003 = vrcp.pop %v1002
        %v1004 = vld [vmem:[%s782] sm:$0xff]
        %1006 = vset.pattern.permute.xlu0 0
        %1007 = vperm.xlu0 %1006, %v1003
        %v1008 = vpop.permute.xlu0 %1007
        %v1010 = vmul.f32 %v1004, %v1008
        %v1011 = vpack.c.bf16 %v1010, %v1010
        %1013 = vrot.lane.b32.xlu0 %v1011, 8
        %v1014 = vpop.permute.xlu0 %1013
        %vm1016 = vcmask 126016
        %1017 = vst.msk [vmem:[%s265] sm:$0xf] %vm1016, %v1014
        %v1018 = vld [vmem:[%s863] sm:$0xff]
        %v1019 = vrcp.pop %v1018
        %v1020 = vld [vmem:[%s871] sm:$0xff]
        %1022 = vset.pattern.permute.xlu0 0
        %1023 = vperm.xlu0 %1022, %v1019
        %v1024 = vpop.permute.xlu0 %1023
        %v1026 = vmul.f32 %v1020, %v1024
        %v1027 = vpack.c.bf16 %v1026, %v1026
        %1029 = vrot.lane.b32.xlu0 %v1027, 16
        %v1030 = vpop.permute.xlu0 %1029
        %vm1032 = vcmask 191616
        %1033 = vst.msk [vmem:[%s265] sm:$0xf] %vm1032, %v1030
        %v1034 = vld [vmem:[%s949] sm:$0xff]
        %v1035 = vrcp.pop %v1034
        %v1036 = vld [vmem:[%s957] sm:$0xff]
        %1038 = vset.pattern.permute.xlu0 0
        %1039 = vperm.xlu0 %1038, %v1035
        %v1040 = vpop.permute.xlu0 %1039
        %v1042 = vmul.f32 %v1036, %v1040
        %v1043 = vpack.c.bf16 %v1042, %v1042
        %1045 = vrot.lane.b32.xlu0 %v1043, 24
        %v1046 = vpop.permute.xlu0 %1045
        %vm1048 = vcmask 257216
        %1049 = vst.msk [vmem:[%s265] sm:$0xf] %vm1048, %v1046
      $region44: #{gpt2_attention_forward.4} parent=31 // pred_fallthru
        _
      %s1050 = sld [smem:[#allocation7 + %s23]]
      %s1051 = sadd.s32 %s22, %s1050
      %p1052 = scmp.lt.s32.totalorder %s1051, 1
      %s1053 = scalar_select %p1052, %s1051, 1
      %s1054 = smul.addr %s1053, 4
      %s1055 = scalar_lea.vmem %s5, %s1054
      // Predicated region
      $region45: #{gpt2_attention_forward.4} parent=31 // pred_check
        %p1056 = pneg %p142
      $region46: #{gpt2_attention_forward.4} parent=31 // pred_check_branch
        %1058 = sbr.rel (%p1056) target = $region48
      $region47: #{gpt2_attention_forward.4} parent=31 // pred_region
        %s1059 = sld [smem:[#allocation7 + %s23]]
        %s1060 = sadd.s32 %s22, %s1059
      $region48: #{gpt2_attention_forward.4} parent=31 // pred_fallthru
        _
    $region32: #{gpt2_attention_forward.4} parent=5 // pred_fallthru
      _
    %p1061 = scmp.le.s32.totalorder 2, %s13
    // Predicated region
    $region49: #{gpt2_attention_forward.4} parent=5 // pred_check
      %p1062 = pneg %p1061
    $region50: #{gpt2_attention_forward.4} parent=5 // pred_check_branch
      %1064 = sbr.rel (%p1062) target = $region52
    $region51: #{gpt2_attention_forward.4} parent=5 // pred_region
      %s1065 = ssub.s32 %s13, 2
      // Predicated region
      $region53: #{gpt2_attention_forward.4} parent=51 // pred_check
        %p1066 = pneg %p148
      $region54: #{gpt2_attention_forward.4} parent=51 // pred_check_branch
        %1068 = sbr.rel (%p1066) target = $region56
      $region55: #{gpt2_attention_forward.4} parent=51 // pred_region
        %s1069 = sld [smem:[#allocation7 + %s25]]
        %s1070 = sadd.s32 %s24, %s1069
        %p1071 = scmp.lt.s32.totalorder %s1070, 1
        %s1072 = scalar_select %p1071, %s1070, 1
        %s1073 = smul.addr %s1072, 4
        %s1074 = scalar_lea.vmem %s5, %s1073
      $region56: #{gpt2_attention_forward.4} parent=51 // pred_fallthru
        _
    $region52: #{gpt2_attention_forward.4} parent=5 // pred_fallthru
      _
  $region6: #{gpt2_attention_forward.4} parent=0 // loop_footer
    %s17 = sadd.s32 1, %s13
  $region7: #{gpt2_attention_forward.4} parent=0 // loop_footer_branch
    %12 = sbr.rel target = $region3
  $region8: #{gpt2_attention_forward.4} parent=0 // loop_exit
    _

</llo_original>
